<compile_context>
chip_gen: v6e
topology: v6e:2x2x1
jax: 0.10.0
libtpu: 0.0.40
codegen_flags: <defaults>
</compile_context>

<pallas_src>
import jax
import jax.numpy as jnp
from jax import lax
from jax.experimental import pallas as pl
from jax.experimental.pallas import tpu as pltpu

_HID_PAD = 128   # hidden width 100 zero-padded up to one full lane width
_UNROLL = 8      # inner unroll factor (sequence blocks are multiples of 8)


def _latent_encoder_kernel(x_ref, w1_ref, b1_ref, w2_ref, b2_ref, o_ref, acc_ref):
    i = pl.program_id(0)

    @pl.when(i == 0)
    def _init():
        acc_ref[...] = jnp.zeros(acc_ref.shape, acc_ref.dtype)

    # Resident operands: loaded once per grid step, reused across the inner loop.
    w1 = w1_ref[...]            # [D, 128]
    b1 = b1_ref[...]            # [1, 128]
    s_blk = x_ref.shape[0]      # positions handled by this grid step (multiple of 8)

    def body(u8, acc):
        base = pl.multiple_of(u8 * _UNROLL, _UNROLL)
        for u in range(_UNROLL):                      # statically unrolled x8
            s = base + u
            # stage 1: [B, D] @ [D, 128] -> [B, 128]      (MXU, f32 acc)
            h = jnp.dot(x_ref[s], w1, preferred_element_type=jnp.float32) + b1
            # stage 2 partial: [B, 128] @ [128, latent] -> [B, latent]
            acc = acc + jnp.dot(h, w2_ref[s], preferred_element_type=jnp.float32)
        return acc

    part = lax.fori_loop(0, s_blk // _UNROLL, body,
                         jnp.zeros(acc_ref.shape, acc_ref.dtype))
    acc_ref[...] += part        # single VMEM read-modify-write per grid step

    @pl.when(i == pl.num_programs(0) - 1)
    def _finalize():
        o_ref[...] = jnp.tanh(acc_ref[...] + b2_ref[...]).astype(o_ref.dtype)


def _pick_seq_block(S, per_pos_bytes, vmem_budget=24 << 20):
    """Largest multiple of 8 (<=64, VMEM-bounded) dividing the 8-rounded seq len."""
    s_pad = ((S + 7) // 8) * 8
    cap = (vmem_budget // max(per_pos_bytes, 1)) // 8 * 8
    cap = max(8, min(64, cap))
    blk = 8
    for cand in range(8, cap + 1, 8):
        if s_pad % cand == 0:
            blk = cand
    return blk, s_pad


def latent_encoder_forward(x, w1, b1, w2, b2):
    """x: [B, S, D]. w1: [D, 100], b1: [100], w2: [100*S, latent], b2: [latent].

    (w1/w2 are the transposed PyTorch weights so the kernel computes x @ w.)
    Returns y: [B, latent] float32.
    """
    B, S, D = x.shape
    latent = w2.shape[1]
    dt = x.dtype
    itemsize = jnp.dtype(dt).itemsize

    # Per-position, double-buffered VMEM cost of the blocked inputs (x + w2).
    per_pos_bytes = 2 * (B * D + _HID_PAD * latent) * itemsize
    s_blk, s_pad = _pick_seq_block(S, per_pos_bytes)
    n_blk = s_pad // s_blk

    # ---- HBM-side (plain XLA) layout prep: pad 100 -> 128 lanes, split w2 per
    #      sequence position (row-major: w2[s*100+j, :] == w2p[s, j, :]), pad the
    #      sequence axis to a multiple of s_blk with zero w2 rows (-> padded
    #      positions contribute 0), and put the grid axis first on x.
    w1p = jnp.zeros((D, _HID_PAD), dt).at[:, :100].set(w1.astype(dt))
    b1p = jnp.zeros((1, _HID_PAD), dt).at[0, :100].set(b1.astype(dt))
    w2p = jnp.zeros((s_pad, _HID_PAD, latent), dt).at[:S, :100, :].set(
        w2.reshape(S, 100, latent).astype(dt))
    b2p = b2.reshape(1, latent).astype(jnp.float32)

    x_t = jnp.transpose(x, (1, 0, 2))                    # [S, B, D]
    if s_pad != S:
        x_t = jnp.pad(x_t, ((0, s_pad - S), (0, 0), (0, 0)))

    flops = 2 * B * s_pad * D * _HID_PAD + 2 * B * s_pad * _HID_PAD * latent
    bytes_accessed = itemsize * (x_t.size + w1p.size + b1p.size + w2p.size) \
        + 4 * (b2p.size + B * latent)

    return pl.pallas_call(
        _latent_encoder_kernel,
        out_shape=jax.ShapeDtypeStruct((B, latent), jnp.float32),
        grid=(n_blk,),
        in_specs=[
            pl.BlockSpec((s_blk, B, D), lambda i: (i, 0, 0)),              # x block
            pl.BlockSpec((D, _HID_PAD), lambda i: (0, 0)),                 # w1 (resident)
            pl.BlockSpec((1, _HID_PAD), lambda i: (0, 0)),                 # b1 (resident)
            pl.BlockSpec((s_blk, _HID_PAD, latent), lambda i: (i, 0, 0)),  # w2 block
            pl.BlockSpec((1, latent), lambda i: (0, 0)),                   # b2 (resident)
        ],
        out_specs=pl.BlockSpec((B, latent), lambda i: (0, 0)),   # accumulator-resident
        scratch_shapes=[pltpu.VMEM((B, latent), jnp.float32)],
        compiler_params=pltpu.CompilerParams(
            dimension_semantics=("arbitrary",)),   # sequence axis is a reduction
        cost_estimate=pl.CostEstimate(
            flops=flops, transcendentals=B * latent,
            bytes_accessed=bytes_accessed),
    )(x_t, w1p, b1p, w2p, b2p)


def _init_linear(key, fan_in, fan_out):
    # PyTorch nn.Linear default init: U(-1/sqrt(fan_in), 1/sqrt(fan_in)),
    # weight stored transposed ([fan_in, fan_out]) so the kernel computes x @ w.
    kw, kb = jax.random.split(key)
    bound = 1.0 / (fan_in ** 0.5)
    w = jax.random.uniform(kw, (fan_in, fan_out), jnp.float32, -bound, bound)
    b = jax.random.uniform(kb, (fan_out,), jnp.float32, -bound, bound)
    return w, b


if __name__ == "__main__":
    # config: d_model=128 (>100), n_positions=8, latent_size=32 (< 100*8)
    B, S, D, LATENT = 2, 8, 128, 32

    key = jax.random.PRNGKey(0)
    kx, k1, k2 = jax.random.split(key, 3)

    x = jax.random.normal(kx, (B, S, D), jnp.float32)
    w1, b1 = _init_linear(k1, D, 100)            # shrink_tokens
    w2, b2 = _init_linear(k2, 100 * S, LATENT)   # shrink_sequence

    out = jax.block_until_ready(latent_encoder_forward(x, w1, b1, w2, b2))
    assert out.shape == (B, LATENT) and out.dtype == jnp.float32

    # reference check in plain JAX (original formulation with the flatten)
    ref = jnp.tanh((x @ w1 + b1).reshape(B, S * 100) @ w2 + b2)
    assert jnp.allclose(out, ref, atol=1e-5, rtol=1e-5), \
        float(jnp.max(jnp.abs(out - ref)))

    print("KERNEL_OK")
</pallas_src>

<mosaic_0001>
module attributes {stable_mosaic.version = 11 : i64} {
  func.func @_latent_encoder_kernel(%arg0: i32, %arg1: memref<8x2x128xf32, #tpu.memory_space<vmem>>, %arg2: memref<128x128xf32, #tpu.memory_space<vmem>>, %arg3: memref<1x128xf32, #tpu.memory_space<vmem>>, %arg4: memref<8x128x32xf32, #tpu.memory_space<vmem>>, %arg5: memref<1x32xf32, #tpu.memory_space<vmem>>, %arg6: memref<2x32xf32, #tpu.memory_space<vmem>>, %arg7: memref<2x32xf32, #tpu.memory_space<vmem>>) attributes {dimension_semantics = [#tpu.dimension_semantics<arbitrary>], iteration_bounds = array<i64: 1>, scalar_prefetch = 0 : i64, scratch_operands = 1 : i64, tpu.core_type = #tpu.core_type<tc>, window_params = [{transform_indices = @transform_0, window_bounds = array<i64: 8, 2, 128>}, {pipeline_mode = #tpu.pipeline_mode<synchronous>, transform_indices = @transform_1, window_bounds = array<i64: 128, 128>}, {pipeline_mode = #tpu.pipeline_mode<synchronous>, transform_indices = @transform_2, window_bounds = array<i64: 1, 128>}, {transform_indices = @transform_3, window_bounds = array<i64: 8, 128, 32>}, {pipeline_mode = #tpu.pipeline_mode<synchronous>, transform_indices = @transform_4, window_bounds = array<i64: 1, 32>}, {pipeline_mode = #tpu.pipeline_mode<synchronous>, transform_indices = @transform_5, window_bounds = array<i64: 2, 32>}]} {
    %c0_i32 = arith.constant 0 : i32
    %0 = arith.cmpi eq, %arg0, %c0_i32 : i32
    %1 = arith.extui %0 : i1 to i32
    %c0_i32_0 = arith.constant 0 : i32
    %2 = arith.cmpi ne, %1, %c0_i32_0 : i32
    scf.if %2 {
      %cst_61 = arith.constant 0.000000e+00 : f32
      %110 = vector.broadcast %cst_61 : f32 to vector<2x32xf32>
      %c0_62 = arith.constant 0 : index
      %c0_63 = arith.constant 0 : index
      %111 = vector.load %arg7[%c0_62, %c0_63] : memref<2x32xf32, #tpu.memory_space<vmem>>, vector<2x32xf32>
      tpu.vector_store %arg7[%c0_62, %c0_63], %110 {strides = array<i32>} : memref<2x32xf32, #tpu.memory_space<vmem>>, vector<2x32xf32>,
    } else {
    }
    %c0 = arith.constant 0 : index
    %c0_1 = arith.constant 0 : index
    %3 = vector.load %arg2[%c0, %c0_1] : memref<128x128xf32, #tpu.memory_space<vmem>>, vector<128x128xf32>
    %c0_2 = arith.constant 0 : index
    %c0_3 = arith.constant 0 : index
    %4 = vector.load %arg3[%c0_2, %c0_3] : memref<1x128xf32, #tpu.memory_space<vmem>>, vector<1x128xf32>
    %cst = arith.constant 0.000000e+00 : f32
    %5 = vector.broadcast %cst : f32 to vector<2x32xf32>
    %c0_i32_4 = arith.constant 0 : i32
    %c8_i32 = arith.constant 8 : i32
    %6 = arith.muli %c0_i32_4, %c8_i32 : i32
    %7 = tpu.assume_multiple %6, 8 : i32
    %c0_i32_5 = arith.constant 0 : i32
    %8 = arith.addi %7, %c0_i32_5 : i32
    %9 = arith.index_cast %8 : i32 to index
    %c0_6 = arith.constant 0 : index
    %c0_7 = arith.constant 0 : index
    %10 = vector.load %arg1[%9, %c0_6, %c0_7] : memref<8x2x128xf32, #tpu.memory_space<vmem>>, vector<1x2x128xf32>
    %11 = vector.shape_cast %10 : vector<1x2x128xf32> to vector<2x128xf32>
    %cst_8 = arith.constant dense<0.000000e+00> : vector<2x128xf32>
    %12 = tpu.matmul %11, %3, %cst_8 {dimension_numbers = #tpu.dot_dimension_numbers<[1], [0], [0], [1], [0, 0, 1, 1], [], []>} : vector<2x128xf32>, vector<128x128xf32>, vector<2x128xf32> -> vector<2x128xf32>
    %13 = vector.broadcast %4 : vector<1x128xf32> to vector<2x128xf32>
    %14 = arith.addf %12, %13 : vector<2x128xf32>
    %15 = arith.index_cast %8 : i32 to index
    %c0_9 = arith.constant 0 : index
    %c0_10 = arith.constant 0 : index
    %16 = vector.load %arg4[%15, %c0_9, %c0_10] : memref<8x128x32xf32, #tpu.memory_space<vmem>>, vector<1x128x32xf32>
    %17 = vector.shape_cast %16 : vector<1x128x32xf32> to vector<128x32xf32>
    %cst_11 = arith.constant dense<0.000000e+00> : vector<2x32xf32>
    %18 = tpu.matmul %14, %17, %cst_11 {dimension_numbers = #tpu.dot_dimension_numbers<[1], [0], [0], [1], [0, 0, 1, 1], [], []>} : vector<2x128xf32>, vector<128x32xf32>, vector<2x32xf32> -> vector<2x32xf32>
    %19 = arith.addf %5, %18 : vector<2x32xf32>
    %c1_i32 = arith.constant 1 : i32
    %20 = arith.addi %7, %c1_i32 : i32
    %21 = arith.index_cast %20 : i32 to index
    %c0_12 = arith.constant 0 : index
    %c0_13 = arith.constant 0 : index
    %22 = vector.load %arg1[%21, %c0_12, %c0_13] : memref<8x2x128xf32, #tpu.memory_space<vmem>>, vector<1x2x128xf32>
    %23 = vector.shape_cast %22 : vector<1x2x128xf32> to vector<2x128xf32>
    %cst_14 = arith.constant dense<0.000000e+00> : vector<2x128xf32>
    %24 = tpu.matmul %23, %3, %cst_14 {dimension_numbers = #tpu.dot_dimension_numbers<[1], [0], [0], [1], [0, 0, 1, 1], [], []>} : vector<2x128xf32>, vector<128x128xf32>, vector<2x128xf32> -> vector<2x128xf32>
    %25 = vector.broadcast %4 : vector<1x128xf32> to vector<2x128xf32>
    %26 = arith.addf %24, %25 : vector<2x128xf32>
    %27 = arith.index_cast %20 : i32 to index
    %c0_15 = arith.constant 0 : index
    %c0_16 = arith.constant 0 : index
    %28 = vector.load %arg4[%27, %c0_15, %c0_16] : memref<8x128x32xf32, #tpu.memory_space<vmem>>, vector<1x128x32xf32>
    %29 = vector.shape_cast %28 : vector<1x128x32xf32> to vector<128x32xf32>
    %cst_17 = arith.constant dense<0.000000e+00> : vector<2x32xf32>
    %30 = tpu.matmul %26, %29, %cst_17 {dimension_numbers = #tpu.dot_dimension_numbers<[1], [0], [0], [1], [0, 0, 1, 1], [], []>} : vector<2x128xf32>, vector<128x32xf32>, vector<2x32xf32> -> vector<2x32xf32>
    %31 = arith.addf %19, %30 : vector<2x32xf32>
    %c2_i32 = arith.constant 2 : i32
    %32 = arith.addi %7, %c2_i32 : i32
    %33 = arith.index_cast %32 : i32 to index
    %c0_18 = arith.constant 0 : index
    %c0_19 = arith.constant 0 : index
    %34 = vector.load %arg1[%33, %c0_18, %c0_19] : memref<8x2x128xf32, #tpu.memory_space<vmem>>, vector<1x2x128xf32>
    %35 = vector.shape_cast %34 : vector<1x2x128xf32> to vector<2x128xf32>
    %cst_20 = arith.constant dense<0.000000e+00> : vector<2x128xf32>
    %36 = tpu.matmul %35, %3, %cst_20 {dimension_numbers = #tpu.dot_dimension_numbers<[1], [0], [0], [1], [0, 0, 1, 1], [], []>} : vector<2x128xf32>, vector<128x128xf32>, vector<2x128xf32> -> vector<2x128xf32>
    %37 = vector.broadcast %4 : vector<1x128xf32> to vector<2x128xf32>
    %38 = arith.addf %36, %37 : vector<2x128xf32>
    %39 = arith.index_cast %32 : i32 to index
    %c0_21 = arith.constant 0 : index
    %c0_22 = arith.constant 0 : index
    %40 = vector.load %arg4[%39, %c0_21, %c0_22] : memref<8x128x32xf32, #tpu.memory_space<vmem>>, vector<1x128x32xf32>
    %41 = vector.shape_cast %40 : vector<1x128x32xf32> to vector<128x32xf32>
    %cst_23 = arith.constant dense<0.000000e+00> : vector<2x32xf32>
    %42 = tpu.matmul %38, %41, %cst_23 {dimension_numbers = #tpu.dot_dimension_numbers<[1], [0], [0], [1], [0, 0, 1, 1], [], []>} : vector<2x128xf32>, vector<128x32xf32>, vector<2x32xf32> -> vector<2x32xf32>
    %43 = arith.addf %31, %42 : vector<2x32xf32>
    %c3_i32 = arith.constant 3 : i32
    %44 = arith.addi %7, %c3_i32 : i32
    %45 = arith.index_cast %44 : i32 to index
    %c0_24 = arith.constant 0 : index
    %c0_25 = arith.constant 0 : index
    %46 = vector.load %arg1[%45, %c0_24, %c0_25] : memref<8x2x128xf32, #tpu.memory_space<vmem>>, vector<1x2x128xf32>
    %47 = vector.shape_cast %46 : vector<1x2x128xf32> to vector<2x128xf32>
    %cst_26 = arith.constant dense<0.000000e+00> : vector<2x128xf32>
    %48 = tpu.matmul %47, %3, %cst_26 {dimension_numbers = #tpu.dot_dimension_numbers<[1], [0], [0], [1], [0, 0, 1, 1], [], []>} : vector<2x128xf32>, vector<128x128xf32>, vector<2x128xf32> -> vector<2x128xf32>
    %49 = vector.broadcast %4 : vector<1x128xf32> to vector<2x128xf32>
    %50 = arith.addf %48, %49 : vector<2x128xf32>
    %51 = arith.index_cast %44 : i32 to index
    %c0_27 = arith.constant 0 : index
    %c0_28 = arith.constant 0 : index
    %52 = vector.load %arg4[%51, %c0_27, %c0_28] : memref<8x128x32xf32, #tpu.memory_space<vmem>>, vector<1x128x32xf32>
    %53 = vector.shape_cast %52 : vector<1x128x32xf32> to vector<128x32xf32>
    %cst_29 = arith.constant dense<0.000000e+00> : vector<2x32xf32>
    %54 = tpu.matmul %50, %53, %cst_29 {dimension_numbers = #tpu.dot_dimension_numbers<[1], [0], [0], [1], [0, 0, 1, 1], [], []>} : vector<2x128xf32>, vector<128x32xf32>, vector<2x32xf32> -> vector<2x32xf32>
    %55 = arith.addf %43, %54 : vector<2x32xf32>
    %c4_i32 = arith.constant 4 : i32
    %56 = arith.addi %7, %c4_i32 : i32
    %57 = arith.index_cast %56 : i32 to index
    %c0_30 = arith.constant 0 : index
    %c0_31 = arith.constant 0 : index
    %58 = vector.load %arg1[%57, %c0_30, %c0_31] : memref<8x2x128xf32, #tpu.memory_space<vmem>>, vector<1x2x128xf32>
    %59 = vector.shape_cast %58 : vector<1x2x128xf32> to vector<2x128xf32>
    %cst_32 = arith.constant dense<0.000000e+00> : vector<2x128xf32>
    %60 = tpu.matmul %59, %3, %cst_32 {dimension_numbers = #tpu.dot_dimension_numbers<[1], [0], [0], [1], [0, 0, 1, 1], [], []>} : vector<2x128xf32>, vector<128x128xf32>, vector<2x128xf32> -> vector<2x128xf32>
    %61 = vector.broadcast %4 : vector<1x128xf32> to vector<2x128xf32>
    %62 = arith.addf %60, %61 : vector<2x128xf32>
    %63 = arith.index_cast %56 : i32 to index
    %c0_33 = arith.constant 0 : index
    %c0_34 = arith.constant 0 : index
    %64 = vector.load %arg4[%63, %c0_33, %c0_34] : memref<8x128x32xf32, #tpu.memory_space<vmem>>, vector<1x128x32xf32>
    %65 = vector.shape_cast %64 : vector<1x128x32xf32> to vector<128x32xf32>
    %cst_35 = arith.constant dense<0.000000e+00> : vector<2x32xf32>
    %66 = tpu.matmul %62, %65, %cst_35 {dimension_numbers = #tpu.dot_dimension_numbers<[1], [0], [0], [1], [0, 0, 1, 1], [], []>} : vector<2x128xf32>, vector<128x32xf32>, vector<2x32xf32> -> vector<2x32xf32>
    %67 = arith.addf %55, %66 : vector<2x32xf32>
    %c5_i32 = arith.constant 5 : i32
    %68 = arith.addi %7, %c5_i32 : i32
    %69 = arith.index_cast %68 : i32 to index
    %c0_36 = arith.constant 0 : index
    %c0_37 = arith.constant 0 : index
    %70 = vector.load %arg1[%69, %c0_36, %c0_37] : memref<8x2x128xf32, #tpu.memory_space<vmem>>, vector<1x2x128xf32>
    %71 = vector.shape_cast %70 : vector<1x2x128xf32> to vector<2x128xf32>
    %cst_38 = arith.constant dense<0.000000e+00> : vector<2x128xf32>
    %72 = tpu.matmul %71, %3, %cst_38 {dimension_numbers = #tpu.dot_dimension_numbers<[1], [0], [0], [1], [0, 0, 1, 1], [], []>} : vector<2x128xf32>, vector<128x128xf32>, vector<2x128xf32> -> vector<2x128xf32>
    %73 = vector.broadcast %4 : vector<1x128xf32> to vector<2x128xf32>
    %74 = arith.addf %72, %73 : vector<2x128xf32>
    %75 = arith.index_cast %68 : i32 to index
    %c0_39 = arith.constant 0 : index
    %c0_40 = arith.constant 0 : index
    %76 = vector.load %arg4[%75, %c0_39, %c0_40] : memref<8x128x32xf32, #tpu.memory_space<vmem>>, vector<1x128x32xf32>
    %77 = vector.shape_cast %76 : vector<1x128x32xf32> to vector<128x32xf32>
    %cst_41 = arith.constant dense<0.000000e+00> : vector<2x32xf32>
    %78 = tpu.matmul %74, %77, %cst_41 {dimension_numbers = #tpu.dot_dimension_numbers<[1], [0], [0], [1], [0, 0, 1, 1], [], []>} : vector<2x128xf32>, vector<128x32xf32>, vector<2x32xf32> -> vector<2x32xf32>
    %79 = arith.addf %67, %78 : vector<2x32xf32>
    %c6_i32 = arith.constant 6 : i32
    %80 = arith.addi %7, %c6_i32 : i32
    %81 = arith.index_cast %80 : i32 to index
    %c0_42 = arith.constant 0 : index
    %c0_43 = arith.constant 0 : index
    %82 = vector.load %arg1[%81, %c0_42, %c0_43] : memref<8x2x128xf32, #tpu.memory_space<vmem>>, vector<1x2x128xf32>
    %83 = vector.shape_cast %82 : vector<1x2x128xf32> to vector<2x128xf32>
    %cst_44 = arith.constant dense<0.000000e+00> : vector<2x128xf32>
    %84 = tpu.matmul %83, %3, %cst_44 {dimension_numbers = #tpu.dot_dimension_numbers<[1], [0], [0], [1], [0, 0, 1, 1], [], []>} : vector<2x128xf32>, vector<128x128xf32>, vector<2x128xf32> -> vector<2x128xf32>
    %85 = vector.broadcast %4 : vector<1x128xf32> to vector<2x128xf32>
    %86 = arith.addf %84, %85 : vector<2x128xf32>
    %87 = arith.index_cast %80 : i32 to index
    %c0_45 = arith.constant 0 : index
    %c0_46 = arith.constant 0 : index
    %88 = vector.load %arg4[%87, %c0_45, %c0_46] : memref<8x128x32xf32, #tpu.memory_space<vmem>>, vector<1x128x32xf32>
    %89 = vector.shape_cast %88 : vector<1x128x32xf32> to vector<128x32xf32>
    %cst_47 = arith.constant dense<0.000000e+00> : vector<2x32xf32>
    %90 = tpu.matmul %86, %89, %cst_47 {dimension_numbers = #tpu.dot_dimension_numbers<[1], [0], [0], [1], [0, 0, 1, 1], [], []>} : vector<2x128xf32>, vector<128x32xf32>, vector<2x32xf32> -> vector<2x32xf32>
    %91 = arith.addf %79, %90 : vector<2x32xf32>
    %c7_i32 = arith.constant 7 : i32
    %92 = arith.addi %7, %c7_i32 : i32
    %93 = arith.index_cast %92 : i32 to index
    %c0_48 = arith.constant 0 : index
    %c0_49 = arith.constant 0 : index
    %94 = vector.load %arg1[%93, %c0_48, %c0_49] : memref<8x2x128xf32, #tpu.memory_space<vmem>>, vector<1x2x128xf32>
    %95 = vector.shape_cast %94 : vector<1x2x128xf32> to vector<2x128xf32>
    %cst_50 = arith.constant dense<0.000000e+00> : vector<2x128xf32>
    %96 = tpu.matmul %95, %3, %cst_50 {dimension_numbers = #tpu.dot_dimension_numbers<[1], [0], [0], [1], [0, 0, 1, 1], [], []>} : vector<2x128xf32>, vector<128x128xf32>, vector<2x128xf32> -> vector<2x128xf32>
    %97 = vector.broadcast %4 : vector<1x128xf32> to vector<2x128xf32>
    %98 = arith.addf %96, %97 : vector<2x128xf32>
    %99 = arith.index_cast %92 : i32 to index
    %c0_51 = arith.constant 0 : index
    %c0_52 = arith.constant 0 : index
    %100 = vector.load %arg4[%99, %c0_51, %c0_52] : memref<8x128x32xf32, #tpu.memory_space<vmem>>, vector<1x128x32xf32>
    %101 = vector.shape_cast %100 : vector<1x128x32xf32> to vector<128x32xf32>
    %cst_53 = arith.constant dense<0.000000e+00> : vector<2x32xf32>
    %102 = tpu.matmul %98, %101, %cst_53 {dimension_numbers = #tpu.dot_dimension_numbers<[1], [0], [0], [1], [0, 0, 1, 1], [], []>} : vector<2x128xf32>, vector<128x32xf32>, vector<2x32xf32> -> vector<2x32xf32>
    %103 = arith.addf %91, %102 : vector<2x32xf32>
    %c1_i32_54 = arith.constant 1 : i32
    %c0_55 = arith.constant 0 : index
    %c0_56 = arith.constant 0 : index
    %104 = vector.load %arg7[%c0_55, %c0_56] : memref<2x32xf32, #tpu.memory_space<vmem>>, vector<2x32xf32>
    %105 = arith.addf %104, %103 : vector<2x32xf32>
    %c0_57 = arith.constant 0 : index
    %c0_58 = arith.constant 0 : index
    %106 = vector.load %arg7[%c0_57, %c0_58] : memref<2x32xf32, #tpu.memory_space<vmem>>, vector<2x32xf32>
    tpu.vector_store %arg7[%c0_57, %c0_58], %105 {strides = array<i32>} : memref<2x32xf32, #tpu.memory_space<vmem>>, vector<2x32xf32>,
    %c0_i32_59 = arith.constant 0 : i32
    %107 = arith.cmpi eq, %arg0, %c0_i32_59 : i32
    %108 = arith.extui %107 : i1 to i32
    %c0_i32_60 = arith.constant 0 : i32
    %109 = arith.cmpi ne, %108, %c0_i32_60 : i32
    scf.if %109 {
      %c0_61 = arith.constant 0 : index
      %c0_62 = arith.constant 0 : index
      %110 = vector.load %arg7[%c0_61, %c0_62] : memref<2x32xf32, #tpu.memory_space<vmem>>, vector<2x32xf32>
      %c0_63 = arith.constant 0 : index
      %c0_64 = arith.constant 0 : index
      %111 = vector.load %arg5[%c0_63, %c0_64] : memref<1x32xf32, #tpu.memory_space<vmem>>, vector<1x32xf32>
      %112 = vector.broadcast %111 : vector<1x32xf32> to vector<2x32xf32>
      %113 = arith.addf %110, %112 : vector<2x32xf32>
      %114 = math.tanh %113 : vector<2x32xf32>
      %c0_65 = arith.constant 0 : index
      %c0_66 = arith.constant 0 : index
      %115 = vector.load %arg6[%c0_65, %c0_66] : memref<2x32xf32, #tpu.memory_space<vmem>>, vector<2x32xf32>
      tpu.vector_store %arg6[%c0_65, %c0_66], %114 {strides = array<i32>} : memref<2x32xf32, #tpu.memory_space<vmem>>, vector<2x32xf32>,
    } else {
    }
    return
  }
  func.func @transform_0(%arg0: i32) -> (i32, i32, i32) {
    %c0_i32 = arith.constant 0 : i32
    %c0_i32_0 = arith.constant 0 : i32
    %c0_i32_1 = arith.constant 0 : i32
    return %arg0, %c0_i32, %c0_i32_0 : i32, i32, i32
  }
  func.func @transform_1(%arg0: i32) -> (i32, i32) {
    %c0_i32 = arith.constant 0 : i32
    %c0_i32_0 = arith.constant 0 : i32
    %c0_i32_1 = arith.constant 0 : i32
    return %c0_i32, %c0_i32_0 : i32, i32
  }
  func.func @transform_2(%arg0: i32) -> (i32, i32) {
    %c0_i32 = arith.constant 0 : i32
    %c0_i32_0 = arith.constant 0 : i32
    %c0_i32_1 = arith.constant 0 : i32
    return %c0_i32, %c0_i32_0 : i32, i32
  }
  func.func @transform_3(%arg0: i32) -> (i32, i32, i32) {
    %c0_i32 = arith.constant 0 : i32
    %c0_i32_0 = arith.constant 0 : i32
    %c0_i32_1 = arith.constant 0 : i32
    return %arg0, %c0_i32, %c0_i32_0 : i32, i32, i32
  }
  func.func @transform_4(%arg0: i32) -> (i32, i32) {
    %c0_i32 = arith.constant 0 : i32
    %c0_i32_0 = arith.constant 0 : i32
    %c0_i32_1 = arith.constant 0 : i32
    return %c0_i32, %c0_i32_0 : i32, i32
  }
  func.func @transform_5(%arg0: i32) -> (i32, i32) {
    %c0_i32 = arith.constant 0 : i32
    %c0_i32_0 = arith.constant 0 : i32
    %c0_i32_1 = arith.constant 0 : i32
    return %c0_i32, %c0_i32_0 : i32, i32
  }
}

</mosaic_0001>

<llo_original>
// kernel: tpu_custom_call.1
$region0: #{tpu_custom_call.1}
  #allocation0 [shape = 'u32[]', space=smem, size = 0x4, offset = 0x4, fixed_abs, tag = 'smem constant byte address 0x4 - core index']
  #allocation1 [shape = 'u32[144,128]{1,0:T(1,128)}', space=vmem, size = 0x12000, scoped, tag = 'internal scratch']
  #allocation2 [shape = 'f32[2,32]{1,0:T(2,128)}', space=vmem, size = 0x400, scoped, tag = 'scratch operand']
  %s0 = inlined_call_operand.vmem [shape: f32[8,2,128], index: 0, kind: input, shape index: {}]
  %s1 = inlined_call_operand.vmem [shape: f32[128,128], index: 1, kind: input, shape index: {}]
  %s2 = inlined_call_operand.vmem [shape: f32[1,128], index: 2, kind: input, shape index: {}]
  %s3 = inlined_call_operand.vmem [shape: f32[8,128,32], index: 3, kind: input, shape index: {}]
  %s4 = inlined_call_operand.vmem [shape: f32[1,32], index: 4, kind: input, shape index: {}]
  %s5 = inlined_call_operand.hbm [shape: f32[2,32], index: 5, kind: output, shape index: {}]
  %s6 = sld [smem:[#allocation0]]
  $region38: #{tpu_custom_call.1} parent=0
    _
  %s8 = ssub.s32 1, %s6
  %s9 = scalar_select 0, %s8, %s6
  $region1: #{tpu_custom_call.1} parent=0
    #allocation3 [shape = 'u8[1024]{0}', space=vmem, size = 0x400, scoped, tag = 'output window, operand 0, single buffered']
    #allocation4 [shape = 's32[1]{0}', space=sflag, size = 0x4, scoped, tag = 'scoped memory for tpu_custom_call.1']
    %10 = vsyncpa [#allocation4], 0
    // Predicated region
    $region2: #{tpu_custom_call.1} parent=1 // pred_check
      _
    $region3: #{tpu_custom_call.1} parent=1 // pred_check_branch
      %12 = sbr.rel (0) target = $region5
    $region4: #{tpu_custom_call.1} parent=1 // pred_region
      _
    $region5: #{tpu_custom_call.1} parent=1 // pred_fallthru
      _
    // Predicated region
    $region6: #{tpu_custom_call.1} parent=1 // pred_check
      _
    $region7: #{tpu_custom_call.1} parent=1 // pred_check_branch
      %14 = sbr.rel (0) target = $region9
    $region8: #{tpu_custom_call.1} parent=1 // pred_region
      _
    $region9: #{tpu_custom_call.1} parent=1 // pred_fallthru
      _
    // Predicated region
    $region10: #{tpu_custom_call.1} parent=1 // pred_check
      _
    $region11: #{tpu_custom_call.1} parent=1 // pred_check_branch
      %16 = sbr.rel (0) target = $region13
    $region12: #{tpu_custom_call.1} parent=1 // pred_region
      _
    $region13: #{tpu_custom_call.1} parent=1 // pred_fallthru
      _
    // Predicated region
    $region14: #{tpu_custom_call.1} parent=1 // pred_check
      _
    $region15: #{tpu_custom_call.1} parent=1 // pred_check_branch
      %18 = sbr.rel (0) target = $region17
    $region16: #{tpu_custom_call.1} parent=1 // pred_region
      _
    $region17: #{tpu_custom_call.1} parent=1 // pred_fallthru
      _
    // Predicated region
    $region18: #{tpu_custom_call.1} parent=1 // pred_check
      _
    $region19: #{tpu_custom_call.1} parent=1 // pred_check_branch
      %20 = sbr.rel (0) target = $region21
    $region20: #{tpu_custom_call.1} parent=1 // pred_region
      _
    $region21: #{tpu_custom_call.1} parent=1 // pred_fallthru
      _
    %p21 = scmp.eq.s32.totalorder 0, 0
    // Predicated region
    $region22: #{tpu_custom_call.1} parent=1 // pred_check
      %p22 = pneg %p21
    $region23: #{tpu_custom_call.1} parent=1 // pred_check_branch
      %24 = sbr.rel (%p22) target = $region25
    $region24: #{tpu_custom_call.1} parent=1 // pred_region
      %vm25 = vcmask 254976
      %26 = vst.msk [vmem:[#allocation2] sm:$0x3] %vm25, 0.0
    $region25: #{tpu_custom_call.1} parent=1 // pred_fallthru
      _
    %v27 = vld [vmem:[%s1] sm:$0xff]
    %v28 = vld [vmem:[%s1 + $0x8] sm:$0xff]
    %v29 = vld [vmem:[%s1 + $0x10] sm:$0xff]
    %v30 = vld [vmem:[%s1 + $0x18] sm:$0xff]
    %v31 = vld [vmem:[%s1 + $0x20] sm:$0xff]
    %v32 = vld [vmem:[%s1 + $0x28] sm:$0xff]
    %v33 = vld [vmem:[%s1 + $0x30] sm:$0xff]
    %v34 = vld [vmem:[%s1 + $0x38] sm:$0xff]
    %v35 = vld [vmem:[%s1 + $0x40] sm:$0xff]
    %v36 = vld [vmem:[%s1 + $0x48] sm:$0xff]
    %v37 = vld [vmem:[%s1 + $0x50] sm:$0xff]
    %v38 = vld [vmem:[%s1 + $0x58] sm:$0xff]
    %v39 = vld [vmem:[%s1 + $0x60] sm:$0xff]
    %v40 = vld [vmem:[%s1 + $0x68] sm:$0xff]
    %v41 = vld [vmem:[%s1 + $0x70] sm:$0xff]
    %v42 = vld [vmem:[%s1 + $0x78] sm:$0xff]
    %v43 = vld [vmem:[%s2] sm:$0x1]
    %s44 = smul.u32 0, 2
    %s45 = scalar_lea.vmem %s0, %s44
    %v46 = vld [vmem:[%s45] sm:$0x3]
    %v48 = vlaneseq
    %v49 = vshrl.u32 %v48, 7
    %v50 = vsub.s32 0, %v49
    %v51 = vrot.slane %v43, %v50
    %53 = vmatprep.subr.mxu0 0.0
    %54 = vmatpush1.msra.mxu0 %v42
    %55 = vmatprep.subr.mxu0 0.0
    %56 = vmatpush1.msra.mxu0 %v41
    %57 = vmatprep.subr.mxu0 0.0
    %58 = vmatpush1.msra.mxu0 %v40
    %59 = vmatprep.subr.mxu0 0.0
    %60 = vmatpush1.msra.mxu0 %v39
    %61 = vmatprep.subr.mxu0 0.0
    %62 = vmatpush1.msra.mxu0 %v38
    %63 = vmatprep.subr.mxu0 0.0
    %64 = vmatpush1.msra.mxu0 %v37
    %65 = vmatprep.subr.mxu0 0.0
    %66 = vmatpush1.msra.mxu0 %v36
    %67 = vmatprep.subr.mxu0 0.0
    %68 = vmatpush1.msra.mxu0 %v35
    %69 = vmatprep.subr.mxu0 0.0
    %70 = vmatpush1.msra.mxu0 %v34
    %71 = vmatprep.subr.mxu0 0.0
    %72 = vmatpush1.msra.mxu0 %v33
    %73 = vmatprep.subr.mxu0 0.0
    %74 = vmatpush1.msra.mxu0 %v32
    %75 = vmatprep.subr.mxu0 0.0
    %76 = vmatpush1.msra.mxu0 %v31
    %77 = vmatprep.subr.mxu0 0.0
    %78 = vmatpush1.msra.mxu0 %v30
    %79 = vmatprep.subr.mxu0 0.0
    %80 = vmatpush1.msra.mxu0 %v29
    %81 = vmatprep.subr.mxu0 0.0
    %82 = vmatpush1.msra.mxu0 %v28
    %83 = vmatprep.subr.mxu0 0.0
    %84 = vmatpush1.msra.mxu0 %v27
    %85 = vmatprep.subr.mxu0 0.0
    %86 = vmatpush2.msra.mxu0 0.0
    %87 = vmatprep.subr.mxu0 0.0
    %88 = vmatpush2.msra.mxu0 0.0
    %89 = vmatprep.subr.mxu0 0.0
    %90 = vmatpush2.msra.mxu0 0.0
    %91 = vmatprep.subr.mxu0 0.0
    %92 = vmatpush2.msra.mxu0 0.0
    %93 = vmatprep.subr.mxu0 0.0
    %94 = vmatpush2.msra.mxu0 0.0
    %95 = vmatprep.subr.mxu0 0.0
    %96 = vmatpush2.msra.mxu0 0.0
    %97 = vmatprep.subr.mxu0 0.0
    %98 = vmatpush2.msra.mxu0 0.0
    %99 = vmatprep.subr.mxu0 0.0
    %100 = vmatpush2.msra.mxu0 0.0
    %101 = vmatprep.subr.mxu0 0.0
    %102 = vmatpush2.msra.mxu0 0.0
    %103 = vmatprep.subr.mxu0 0.0
    %104 = vmatpush2.msra.mxu0 0.0
    %105 = vmatprep.subr.mxu0 0.0
    %106 = vmatpush2.msra.mxu0 0.0
    %107 = vmatprep.subr.mxu0 0.0
    %108 = vmatpush2.msra.mxu0 0.0
    %109 = vmatprep.subr.mxu0 0.0
    %110 = vmatpush2.msra.mxu0 0.0
    %111 = vmatprep.subr.mxu0 0.0
    %112 = vmatpush2.msra.mxu0 0.0
    %113 = vmatprep.subr.mxu0 0.0
    %114 = vmatpush2.msra.mxu0 0.0
    %115 = vmatprep.subr.mxu0 0.0
    %116 = vmatpush2.msra.mxu0 0.0
    %117 = vmatprep.mubr.f32.mxu0 0.0
    %118 = vmatmul.mubr.f32.gmra.mxu0 %v46
    %v119 = vpop.f32.mrf.mxu0
    %v120 = vadd.f32 %v51, %v119
    %v121 = vpop.f32.mrf.mxu0
    %122 = vdwg.mxu0
    %s123 = smul.u32 0, 128
    %s124 = scalar_lea.vmem %s3, %s123
    %v125 = vld [vmem:[%s124] sm:$0xff]
    %v126 = vld [vmem:[%s124 + $0x8] sm:$0xff]
    %v127 = vld [vmem:[%s124 + $0x10] sm:$0xff]
    %v128 = vld [vmem:[%s124 + $0x18] sm:$0xff]
    %v129 = vld [vmem:[%s124 + $0x20] sm:$0xff]
    %v130 = vld [vmem:[%s124 + $0x28] sm:$0xff]
    %v131 = vld [vmem:[%s124 + $0x30] sm:$0xff]
    %v132 = vld [vmem:[%s124 + $0x38] sm:$0xff]
    %v133 = vld [vmem:[%s124 + $0x40] sm:$0xff]
    %v134 = vld [vmem:[%s124 + $0x48] sm:$0xff]
    %v135 = vld [vmem:[%s124 + $0x50] sm:$0xff]
    %v136 = vld [vmem:[%s124 + $0x58] sm:$0xff]
    %v137 = vld [vmem:[%s124 + $0x60] sm:$0xff]
    %v138 = vld [vmem:[%s124 + $0x68] sm:$0xff]
    %v139 = vld [vmem:[%s124 + $0x70] sm:$0xff]
    %v140 = vld [vmem:[%s124 + $0x78] sm:$0xff]
    %s141 = sadd.s32 0, 1
    %s142 = smul.u32 %s141, 2
    %s143 = scalar_lea.vmem %s0, %s142
    %v144 = vld [vmem:[%s143] sm:$0x3]
    %145 = vmatprep.subr.mxu0 0.0
    %146 = vmatpush1.msra.mxu0 %v42
    %147 = vmatprep.subr.mxu0 0.0
    %148 = vmatpush1.msra.mxu0 %v41
    %149 = vmatprep.subr.mxu0 0.0
    %150 = vmatpush1.msra.mxu0 %v40
    %151 = vmatprep.subr.mxu0 0.0
    %152 = vmatpush1.msra.mxu0 %v39
    %153 = vmatprep.subr.mxu0 0.0
    %154 = vmatpush1.msra.mxu0 %v38
    %155 = vmatprep.subr.mxu0 0.0
    %156 = vmatpush1.msra.mxu0 %v37
    %157 = vmatprep.subr.mxu0 0.0
    %158 = vmatpush1.msra.mxu0 %v36
    %159 = vmatprep.subr.mxu0 0.0
    %160 = vmatpush1.msra.mxu0 %v35
    %161 = vmatprep.subr.mxu0 0.0
    %162 = vmatpush1.msra.mxu0 %v34
    %163 = vmatprep.subr.mxu0 0.0
    %164 = vmatpush1.msra.mxu0 %v33
    %165 = vmatprep.subr.mxu0 0.0
    %166 = vmatpush1.msra.mxu0 %v32
    %167 = vmatprep.subr.mxu0 0.0
    %168 = vmatpush1.msra.mxu0 %v31
    %169 = vmatprep.subr.mxu0 0.0
    %170 = vmatpush1.msra.mxu0 %v30
    %171 = vmatprep.subr.mxu0 0.0
    %172 = vmatpush1.msra.mxu0 %v29
    %173 = vmatprep.subr.mxu0 0.0
    %174 = vmatpush1.msra.mxu0 %v28
    %175 = vmatprep.subr.mxu0 0.0
    %176 = vmatpush1.msra.mxu0 %v27
    %177 = vmatprep.subr.mxu0 0.0
    %178 = vmatpush2.msra.mxu0 0.0
    %179 = vmatprep.subr.mxu0 0.0
    %180 = vmatpush2.msra.mxu0 0.0
    %181 = vmatprep.subr.mxu0 0.0
    %182 = vmatpush2.msra.mxu0 0.0
    %183 = vmatprep.subr.mxu0 0.0
    %184 = vmatpush2.msra.mxu0 0.0
    %185 = vmatprep.subr.mxu0 0.0
    %186 = vmatpush2.msra.mxu0 0.0
    %187 = vmatprep.subr.mxu0 0.0
    %188 = vmatpush2.msra.mxu0 0.0
    %189 = vmatprep.subr.mxu0 0.0
    %190 = vmatpush2.msra.mxu0 0.0
    %191 = vmatprep.subr.mxu0 0.0
    %192 = vmatpush2.msra.mxu0 0.0
    %193 = vmatprep.subr.mxu0 0.0
    %194 = vmatpush2.msra.mxu0 0.0
    %195 = vmatprep.subr.mxu0 0.0
    %196 = vmatpush2.msra.mxu0 0.0
    %197 = vmatprep.subr.mxu0 0.0
    %198 = vmatpush2.msra.mxu0 0.0
    %199 = vmatprep.subr.mxu0 0.0
    %200 = vmatpush2.msra.mxu0 0.0
    %201 = vmatprep.subr.mxu0 0.0
    %202 = vmatpush2.msra.mxu0 0.0
    %203 = vmatprep.subr.mxu0 0.0
    %204 = vmatpush2.msra.mxu0 0.0
    %205 = vmatprep.subr.mxu0 0.0
    %206 = vmatpush2.msra.mxu0 0.0
    %207 = vmatprep.subr.mxu0 0.0
    %208 = vmatpush2.msra.mxu0 0.0
    %209 = vmatprep.mubr.f32.mxu0 0.0
    %210 = vmatmul.mubr.f32.gmra.mxu0 %v144
    %v211 = vpop.f32.mrf.mxu0
    %v212 = vadd.f32 %v51, %v211
    %v213 = vpop.f32.mrf.mxu0
    %214 = vdwg.mxu0
    %s215 = smul.u32 %s141, 128
    %s216 = scalar_lea.vmem %s3, %s215
    %v217 = vld [vmem:[%s216] sm:$0xff]
    %v218 = vld [vmem:[%s216 + $0x8] sm:$0xff]
    %v219 = vld [vmem:[%s216 + $0x10] sm:$0xff]
    %v220 = vld [vmem:[%s216 + $0x18] sm:$0xff]
    %v221 = vld [vmem:[%s216 + $0x20] sm:$0xff]
    %v222 = vld [vmem:[%s216 + $0x28] sm:$0xff]
    %v223 = vld [vmem:[%s216 + $0x30] sm:$0xff]
    %v224 = vld [vmem:[%s216 + $0x38] sm:$0xff]
    %v225 = vld [vmem:[%s216 + $0x40] sm:$0xff]
    %v226 = vld [vmem:[%s216 + $0x48] sm:$0xff]
    %v227 = vld [vmem:[%s216 + $0x50] sm:$0xff]
    %v228 = vld [vmem:[%s216 + $0x58] sm:$0xff]
    %v229 = vld [vmem:[%s216 + $0x60] sm:$0xff]
    %v230 = vld [vmem:[%s216 + $0x68] sm:$0xff]
    %v231 = vld [vmem:[%s216 + $0x70] sm:$0xff]
    %v232 = vld [vmem:[%s216 + $0x78] sm:$0xff]
    %233 = vmatprep.subr.mxu0 0.0
    %234 = vmatpush1.msra.mxu0 %v232
    %235 = vmatprep.subr.mxu0 0.0
    %236 = vmatpush1.msra.mxu0 %v231
    %237 = vmatprep.subr.mxu0 0.0
    %238 = vmatpush1.msra.mxu0 %v230
    %239 = vmatprep.subr.mxu0 0.0
    %240 = vmatpush1.msra.mxu0 %v229
    %241 = vmatprep.subr.mxu0 0.0
    %242 = vmatpush1.msra.mxu0 %v228
    %243 = vmatprep.subr.mxu0 0.0
    %244 = vmatpush1.msra.mxu0 %v227
    %245 = vmatprep.subr.mxu0 0.0
    %246 = vmatpush1.msra.mxu0 %v226
    %247 = vmatprep.subr.mxu0 0.0
    %248 = vmatpush1.msra.mxu0 %v225
    %249 = vmatprep.subr.mxu0 0.0
    %250 = vmatpush1.msra.mxu0 %v224
    %251 = vmatprep.subr.mxu0 0.0
    %252 = vmatpush1.msra.mxu0 %v223
    %253 = vmatprep.subr.mxu0 0.0
    %254 = vmatpush1.msra.mxu0 %v222
    %255 = vmatprep.subr.mxu0 0.0
    %256 = vmatpush1.msra.mxu0 %v221
    %257 = vmatprep.subr.mxu0 0.0
    %258 = vmatpush1.msra.mxu0 %v220
    %259 = vmatprep.subr.mxu0 0.0
    %260 = vmatpush1.msra.mxu0 %v219
    %261 = vmatprep.subr.mxu0 0.0
    %262 = vmatpush1.msra.mxu0 %v218
    %263 = vmatprep.subr.mxu0 0.0
    %264 = vmatpush1.msra.mxu0 %v217
    %265 = vmatprep.subr.mxu0 0.0
    %266 = vmatpush2.msra.mxu0 0.0
    %267 = vmatprep.subr.mxu0 0.0
    %268 = vmatpush2.msra.mxu0 0.0
    %269 = vmatprep.subr.mxu0 0.0
    %270 = vmatpush2.msra.mxu0 0.0
    %271 = vmatprep.subr.mxu0 0.0
    %272 = vmatpush2.msra.mxu0 0.0
    %273 = vmatprep.subr.mxu0 0.0
    %274 = vmatpush2.msra.mxu0 0.0
    %275 = vmatprep.subr.mxu0 0.0
    %276 = vmatpush2.msra.mxu0 0.0
    %277 = vmatprep.subr.mxu0 0.0
    %278 = vmatpush2.msra.mxu0 0.0
    %279 = vmatprep.subr.mxu0 0.0
    %280 = vmatpush2.msra.mxu0 0.0
    %281 = vmatprep.subr.mxu0 0.0
    %282 = vmatpush2.msra.mxu0 0.0
    %283 = vmatprep.subr.mxu0 0.0
    %284 = vmatpush2.msra.mxu0 0.0
    %285 = vmatprep.subr.mxu0 0.0
    %286 = vmatpush2.msra.mxu0 0.0
    %287 = vmatprep.subr.mxu0 0.0
    %288 = vmatpush2.msra.mxu0 0.0
    %289 = vmatprep.subr.mxu0 0.0
    %290 = vmatpush2.msra.mxu0 0.0
    %291 = vmatprep.subr.mxu0 0.0
    %292 = vmatpush2.msra.mxu0 0.0
    %293 = vmatprep.subr.mxu0 0.0
    %294 = vmatpush2.msra.mxu0 0.0
    %295 = vmatprep.subr.mxu0 0.0
    %296 = vmatpush2.msra.mxu0 0.0
    %297 = vmatprep.mubr.f32.mxu0 0.0
    %298 = vmatmul.mubr.f32.gmra.mxu0 %v212
    %v299 = vpop.f32.mrf.mxu0
    %v300 = vadd.f32 0.0, %v299
    %v301 = vpop.f32.mrf.mxu0
    %302 = vdwg.mxu0
    %303 = vmatprep.subr.mxu0 0.0
    %304 = vmatpush1.msra.mxu0 %v140
    %305 = vmatprep.subr.mxu0 0.0
    %306 = vmatpush1.msra.mxu0 %v139
    %307 = vmatprep.subr.mxu0 0.0
    %308 = vmatpush1.msra.mxu0 %v138
    %309 = vmatprep.subr.mxu0 0.0
    %310 = vmatpush1.msra.mxu0 %v137
    %311 = vmatprep.subr.mxu0 0.0
    %312 = vmatpush1.msra.mxu0 %v136
    %313 = vmatprep.subr.mxu0 0.0
    %314 = vmatpush1.msra.mxu0 %v135
    %315 = vmatprep.subr.mxu0 0.0
    %316 = vmatpush1.msra.mxu0 %v134
    %317 = vmatprep.subr.mxu0 0.0
    %318 = vmatpush1.msra.mxu0 %v133
    %319 = vmatprep.subr.mxu0 0.0
    %320 = vmatpush1.msra.mxu0 %v132
    %321 = vmatprep.subr.mxu0 0.0
    %322 = vmatpush1.msra.mxu0 %v131
    %323 = vmatprep.subr.mxu0 0.0
    %324 = vmatpush1.msra.mxu0 %v130
    %325 = vmatprep.subr.mxu0 0.0
    %326 = vmatpush1.msra.mxu0 %v129
    %327 = vmatprep.subr.mxu0 0.0
    %328 = vmatpush1.msra.mxu0 %v128
    %329 = vmatprep.subr.mxu0 0.0
    %330 = vmatpush1.msra.mxu0 %v127
    %331 = vmatprep.subr.mxu0 0.0
    %332 = vmatpush1.msra.mxu0 %v126
    %333 = vmatprep.subr.mxu0 0.0
    %334 = vmatpush1.msra.mxu0 %v125
    %335 = vmatprep.subr.mxu0 0.0
    %336 = vmatpush2.msra.mxu0 0.0
    %337 = vmatprep.subr.mxu0 0.0
    %338 = vmatpush2.msra.mxu0 0.0
    %339 = vmatprep.subr.mxu0 0.0
    %340 = vmatpush2.msra.mxu0 0.0
    %341 = vmatprep.subr.mxu0 0.0
    %342 = vmatpush2.msra.mxu0 0.0
    %343 = vmatprep.subr.mxu0 0.0
    %344 = vmatpush2.msra.mxu0 0.0
    %345 = vmatprep.subr.mxu0 0.0
    %346 = vmatpush2.msra.mxu0 0.0
    %347 = vmatprep.subr.mxu0 0.0
    %348 = vmatpush2.msra.mxu0 0.0
    %349 = vmatprep.subr.mxu0 0.0
    %350 = vmatpush2.msra.mxu0 0.0
    %351 = vmatprep.subr.mxu0 0.0
    %352 = vmatpush2.msra.mxu0 0.0
    %353 = vmatprep.subr.mxu0 0.0
    %354 = vmatpush2.msra.mxu0 0.0
    %355 = vmatprep.subr.mxu0 0.0
    %356 = vmatpush2.msra.mxu0 0.0
    %357 = vmatprep.subr.mxu0 0.0
    %358 = vmatpush2.msra.mxu0 0.0
    %359 = vmatprep.subr.mxu0 0.0
    %360 = vmatpush2.msra.mxu0 0.0
    %361 = vmatprep.subr.mxu0 0.0
    %362 = vmatpush2.msra.mxu0 0.0
    %363 = vmatprep.subr.mxu0 0.0
    %364 = vmatpush2.msra.mxu0 0.0
    %365 = vmatprep.subr.mxu0 0.0
    %366 = vmatpush2.msra.mxu0 0.0
    %367 = vmatprep.mubr.f32.mxu0 0.0
    %368 = vmatmul.mubr.f32.gmra.mxu0 %v120
    %v369 = vpop.f32.mrf.mxu0
    %v370 = vadd.f32 %v300, %v369
    %v371 = vpop.f32.mrf.mxu0
    %372 = vdwg.mxu0
    %s373 = sadd.s32 0, 2
    %s374 = smul.u32 %s373, 2
    %s375 = scalar_lea.vmem %s0, %s374
    %v376 = vld [vmem:[%s375] sm:$0x3]
    %377 = vmatprep.subr.mxu0 0.0
    %378 = vmatpush1.msra.mxu0 %v42
    %379 = vmatprep.subr.mxu0 0.0
    %380 = vmatpush1.msra.mxu0 %v41
    %381 = vmatprep.subr.mxu0 0.0
    %382 = vmatpush1.msra.mxu0 %v40
    %383 = vmatprep.subr.mxu0 0.0
    %384 = vmatpush1.msra.mxu0 %v39
    %385 = vmatprep.subr.mxu0 0.0
    %386 = vmatpush1.msra.mxu0 %v38
    %387 = vmatprep.subr.mxu0 0.0
    %388 = vmatpush1.msra.mxu0 %v37
    %389 = vmatprep.subr.mxu0 0.0
    %390 = vmatpush1.msra.mxu0 %v36
    %391 = vmatprep.subr.mxu0 0.0
    %392 = vmatpush1.msra.mxu0 %v35
    %393 = vmatprep.subr.mxu0 0.0
    %394 = vmatpush1.msra.mxu0 %v34
    %395 = vmatprep.subr.mxu0 0.0
    %396 = vmatpush1.msra.mxu0 %v33
    %397 = vmatprep.subr.mxu0 0.0
    %398 = vmatpush1.msra.mxu0 %v32
    %399 = vmatprep.subr.mxu0 0.0
    %400 = vmatpush1.msra.mxu0 %v31
    %401 = vmatprep.subr.mxu0 0.0
    %402 = vmatpush1.msra.mxu0 %v30
    %403 = vmatprep.subr.mxu0 0.0
    %404 = vmatpush1.msra.mxu0 %v29
    %405 = vmatprep.subr.mxu0 0.0
    %406 = vmatpush1.msra.mxu0 %v28
    %407 = vmatprep.subr.mxu0 0.0
    %408 = vmatpush1.msra.mxu0 %v27
    %409 = vmatprep.subr.mxu0 0.0
    %410 = vmatpush2.msra.mxu0 0.0
    %411 = vmatprep.subr.mxu0 0.0
    %412 = vmatpush2.msra.mxu0 0.0
    %413 = vmatprep.subr.mxu0 0.0
    %414 = vmatpush2.msra.mxu0 0.0
    %415 = vmatprep.subr.mxu0 0.0
    %416 = vmatpush2.msra.mxu0 0.0
    %417 = vmatprep.subr.mxu0 0.0
    %418 = vmatpush2.msra.mxu0 0.0
    %419 = vmatprep.subr.mxu0 0.0
    %420 = vmatpush2.msra.mxu0 0.0
    %421 = vmatprep.subr.mxu0 0.0
    %422 = vmatpush2.msra.mxu0 0.0
    %423 = vmatprep.subr.mxu0 0.0
    %424 = vmatpush2.msra.mxu0 0.0
    %425 = vmatprep.subr.mxu0 0.0
    %426 = vmatpush2.msra.mxu0 0.0
    %427 = vmatprep.subr.mxu0 0.0
    %428 = vmatpush2.msra.mxu0 0.0
    %429 = vmatprep.subr.mxu0 0.0
    %430 = vmatpush2.msra.mxu0 0.0
    %431 = vmatprep.subr.mxu0 0.0
    %432 = vmatpush2.msra.mxu0 0.0
    %433 = vmatprep.subr.mxu0 0.0
    %434 = vmatpush2.msra.mxu0 0.0
    %435 = vmatprep.subr.mxu0 0.0
    %436 = vmatpush2.msra.mxu0 0.0
    %437 = vmatprep.subr.mxu0 0.0
    %438 = vmatpush2.msra.mxu0 0.0
    %439 = vmatprep.subr.mxu0 0.0
    %440 = vmatpush2.msra.mxu0 0.0
    %441 = vmatprep.mubr.f32.mxu0 0.0
    %442 = vmatmul.mubr.f32.gmra.mxu0 %v376
    %v443 = vpop.f32.mrf.mxu0
    %v444 = vadd.f32 %v51, %v443
    %v445 = vpop.f32.mrf.mxu0
    %446 = vdwg.mxu0
    %s447 = smul.u32 %s373, 128
    %s448 = scalar_lea.vmem %s3, %s447
    %v449 = vld [vmem:[%s448] sm:$0xff]
    %v450 = vld [vmem:[%s448 + $0x8] sm:$0xff]
    %v451 = vld [vmem:[%s448 + $0x10] sm:$0xff]
    %v452 = vld [vmem:[%s448 + $0x18] sm:$0xff]
    %v453 = vld [vmem:[%s448 + $0x20] sm:$0xff]
    %v454 = vld [vmem:[%s448 + $0x28] sm:$0xff]
    %v455 = vld [vmem:[%s448 + $0x30] sm:$0xff]
    %v456 = vld [vmem:[%s448 + $0x38] sm:$0xff]
    %v457 = vld [vmem:[%s448 + $0x40] sm:$0xff]
    %v458 = vld [vmem:[%s448 + $0x48] sm:$0xff]
    %v459 = vld [vmem:[%s448 + $0x50] sm:$0xff]
    %v460 = vld [vmem:[%s448 + $0x58] sm:$0xff]
    %v461 = vld [vmem:[%s448 + $0x60] sm:$0xff]
    %v462 = vld [vmem:[%s448 + $0x68] sm:$0xff]
    %v463 = vld [vmem:[%s448 + $0x70] sm:$0xff]
    %v464 = vld [vmem:[%s448 + $0x78] sm:$0xff]
    %465 = vmatprep.subr.mxu0 0.0
    %466 = vmatpush1.msra.mxu0 %v464
    %467 = vmatprep.subr.mxu0 0.0
    %468 = vmatpush1.msra.mxu0 %v463
    %469 = vmatprep.subr.mxu0 0.0
    %470 = vmatpush1.msra.mxu0 %v462
    %471 = vmatprep.subr.mxu0 0.0
    %472 = vmatpush1.msra.mxu0 %v461
    %473 = vmatprep.subr.mxu0 0.0
    %474 = vmatpush1.msra.mxu0 %v460
    %475 = vmatprep.subr.mxu0 0.0
    %476 = vmatpush1.msra.mxu0 %v459
    %477 = vmatprep.subr.mxu0 0.0
    %478 = vmatpush1.msra.mxu0 %v458
    %479 = vmatprep.subr.mxu0 0.0
    %480 = vmatpush1.msra.mxu0 %v457
    %481 = vmatprep.subr.mxu0 0.0
    %482 = vmatpush1.msra.mxu0 %v456
    %483 = vmatprep.subr.mxu0 0.0
    %484 = vmatpush1.msra.mxu0 %v455
    %485 = vmatprep.subr.mxu0 0.0
    %486 = vmatpush1.msra.mxu0 %v454
    %487 = vmatprep.subr.mxu0 0.0
    %488 = vmatpush1.msra.mxu0 %v453
    %489 = vmatprep.subr.mxu0 0.0
    %490 = vmatpush1.msra.mxu0 %v452
    %491 = vmatprep.subr.mxu0 0.0
    %492 = vmatpush1.msra.mxu0 %v451
    %493 = vmatprep.subr.mxu0 0.0
    %494 = vmatpush1.msra.mxu0 %v450
    %495 = vmatprep.subr.mxu0 0.0
    %496 = vmatpush1.msra.mxu0 %v449
    %497 = vmatprep.subr.mxu0 0.0
    %498 = vmatpush2.msra.mxu0 0.0
    %499 = vmatprep.subr.mxu0 0.0
    %500 = vmatpush2.msra.mxu0 0.0
    %501 = vmatprep.subr.mxu0 0.0
    %502 = vmatpush2.msra.mxu0 0.0
    %503 = vmatprep.subr.mxu0 0.0
    %504 = vmatpush2.msra.mxu0 0.0
    %505 = vmatprep.subr.mxu0 0.0
    %506 = vmatpush2.msra.mxu0 0.0
    %507 = vmatprep.subr.mxu0 0.0
    %508 = vmatpush2.msra.mxu0 0.0
    %509 = vmatprep.subr.mxu0 0.0
    %510 = vmatpush2.msra.mxu0 0.0
    %511 = vmatprep.subr.mxu0 0.0
    %512 = vmatpush2.msra.mxu0 0.0
    %513 = vmatprep.subr.mxu0 0.0
    %514 = vmatpush2.msra.mxu0 0.0
    %515 = vmatprep.subr.mxu0 0.0
    %516 = vmatpush2.msra.mxu0 0.0
    %517 = vmatprep.subr.mxu0 0.0
    %518 = vmatpush2.msra.mxu0 0.0
    %519 = vmatprep.subr.mxu0 0.0
    %520 = vmatpush2.msra.mxu0 0.0
    %521 = vmatprep.subr.mxu0 0.0
    %522 = vmatpush2.msra.mxu0 0.0
    %523 = vmatprep.subr.mxu0 0.0
    %524 = vmatpush2.msra.mxu0 0.0
    %525 = vmatprep.subr.mxu0 0.0
    %526 = vmatpush2.msra.mxu0 0.0
    %527 = vmatprep.subr.mxu0 0.0
    %528 = vmatpush2.msra.mxu0 0.0
    %529 = vmatprep.mubr.f32.mxu0 0.0
    %530 = vmatmul.mubr.f32.gmra.mxu0 %v444
    %v531 = vpop.f32.mrf.mxu0
    %v532 = vadd.f32 0.0, %v531
    %v533 = vpop.f32.mrf.mxu0
    %534 = vdwg.mxu0
    %v535 = vadd.f32 %v370, %v532
    %s536 = sadd.s32 0, 3
    %s537 = smul.u32 %s536, 2
    %s538 = scalar_lea.vmem %s0, %s537
    %v539 = vld [vmem:[%s538] sm:$0x3]
    %540 = vmatprep.subr.mxu0 0.0
    %541 = vmatpush1.msra.mxu0 %v42
    %542 = vmatprep.subr.mxu0 0.0
    %543 = vmatpush1.msra.mxu0 %v41
    %544 = vmatprep.subr.mxu0 0.0
    %545 = vmatpush1.msra.mxu0 %v40
    %546 = vmatprep.subr.mxu0 0.0
    %547 = vmatpush1.msra.mxu0 %v39
    %548 = vmatprep.subr.mxu0 0.0
    %549 = vmatpush1.msra.mxu0 %v38
    %550 = vmatprep.subr.mxu0 0.0
    %551 = vmatpush1.msra.mxu0 %v37
    %552 = vmatprep.subr.mxu0 0.0
    %553 = vmatpush1.msra.mxu0 %v36
    %554 = vmatprep.subr.mxu0 0.0
    %555 = vmatpush1.msra.mxu0 %v35
    %556 = vmatprep.subr.mxu0 0.0
    %557 = vmatpush1.msra.mxu0 %v34
    %558 = vmatprep.subr.mxu0 0.0
    %559 = vmatpush1.msra.mxu0 %v33
    %560 = vmatprep.subr.mxu0 0.0
    %561 = vmatpush1.msra.mxu0 %v32
    %562 = vmatprep.subr.mxu0 0.0
    %563 = vmatpush1.msra.mxu0 %v31
    %564 = vmatprep.subr.mxu0 0.0
    %565 = vmatpush1.msra.mxu0 %v30
    %566 = vmatprep.subr.mxu0 0.0
    %567 = vmatpush1.msra.mxu0 %v29
    %568 = vmatprep.subr.mxu0 0.0
    %569 = vmatpush1.msra.mxu0 %v28
    %570 = vmatprep.subr.mxu0 0.0
    %571 = vmatpush1.msra.mxu0 %v27
    %572 = vmatprep.subr.mxu0 0.0
    %573 = vmatpush2.msra.mxu0 0.0
    %574 = vmatprep.subr.mxu0 0.0
    %575 = vmatpush2.msra.mxu0 0.0
    %576 = vmatprep.subr.mxu0 0.0
    %577 = vmatpush2.msra.mxu0 0.0
    %578 = vmatprep.subr.mxu0 0.0
    %579 = vmatpush2.msra.mxu0 0.0
    %580 = vmatprep.subr.mxu0 0.0
    %581 = vmatpush2.msra.mxu0 0.0
    %582 = vmatprep.subr.mxu0 0.0
    %583 = vmatpush2.msra.mxu0 0.0
    %584 = vmatprep.subr.mxu0 0.0
    %585 = vmatpush2.msra.mxu0 0.0
    %586 = vmatprep.subr.mxu0 0.0
    %587 = vmatpush2.msra.mxu0 0.0
    %588 = vmatprep.subr.mxu0 0.0
    %589 = vmatpush2.msra.mxu0 0.0
    %590 = vmatprep.subr.mxu0 0.0
    %591 = vmatpush2.msra.mxu0 0.0
    %592 = vmatprep.subr.mxu0 0.0
    %593 = vmatpush2.msra.mxu0 0.0
    %594 = vmatprep.subr.mxu0 0.0
    %595 = vmatpush2.msra.mxu0 0.0
    %596 = vmatprep.subr.mxu0 0.0
    %597 = vmatpush2.msra.mxu0 0.0
    %598 = vmatprep.subr.mxu0 0.0
    %599 = vmatpush2.msra.mxu0 0.0
    %600 = vmatprep.subr.mxu0 0.0
    %601 = vmatpush2.msra.mxu0 0.0
    %602 = vmatprep.subr.mxu0 0.0
    %603 = vmatpush2.msra.mxu0 0.0
    %604 = vmatprep.mubr.f32.mxu0 0.0
    %605 = vmatmul.mubr.f32.gmra.mxu0 %v539
    %v606 = vpop.f32.mrf.mxu0
    %v607 = vadd.f32 %v51, %v606
    %v608 = vpop.f32.mrf.mxu0
    %609 = vdwg.mxu0
    %s610 = smul.u32 %s536, 128
    %s611 = scalar_lea.vmem %s3, %s610
    %v612 = vld [vmem:[%s611] sm:$0xff]
    %v613 = vld [vmem:[%s611 + $0x8] sm:$0xff]
    %v614 = vld [vmem:[%s611 + $0x10] sm:$0xff]
    %v615 = vld [vmem:[%s611 + $0x18] sm:$0xff]
    %v616 = vld [vmem:[%s611 + $0x20] sm:$0xff]
    %v617 = vld [vmem:[%s611 + $0x28] sm:$0xff]
    %v618 = vld [vmem:[%s611 + $0x30] sm:$0xff]
    %v619 = vld [vmem:[%s611 + $0x38] sm:$0xff]
    %v620 = vld [vmem:[%s611 + $0x40] sm:$0xff]
    %v621 = vld [vmem:[%s611 + $0x48] sm:$0xff]
    %v622 = vld [vmem:[%s611 + $0x50] sm:$0xff]
    %v623 = vld [vmem:[%s611 + $0x58] sm:$0xff]
    %v624 = vld [vmem:[%s611 + $0x60] sm:$0xff]
    %v625 = vld [vmem:[%s611 + $0x68] sm:$0xff]
    %v626 = vld [vmem:[%s611 + $0x70] sm:$0xff]
    %v627 = vld [vmem:[%s611 + $0x78] sm:$0xff]
    %628 = vmatprep.subr.mxu0 0.0
    %629 = vmatpush1.msra.mxu0 %v627
    %630 = vmatprep.subr.mxu0 0.0
    %631 = vmatpush1.msra.mxu0 %v626
    %632 = vmatprep.subr.mxu0 0.0
    %633 = vmatpush1.msra.mxu0 %v625
    %634 = vmatprep.subr.mxu0 0.0
    %635 = vmatpush1.msra.mxu0 %v624
    %636 = vmatprep.subr.mxu0 0.0
    %637 = vmatpush1.msra.mxu0 %v623
    %638 = vmatprep.subr.mxu0 0.0
    %639 = vmatpush1.msra.mxu0 %v622
    %640 = vmatprep.subr.mxu0 0.0
    %641 = vmatpush1.msra.mxu0 %v621
    %642 = vmatprep.subr.mxu0 0.0
    %643 = vmatpush1.msra.mxu0 %v620
    %644 = vmatprep.subr.mxu0 0.0
    %645 = vmatpush1.msra.mxu0 %v619
    %646 = vmatprep.subr.mxu0 0.0
    %647 = vmatpush1.msra.mxu0 %v618
    %648 = vmatprep.subr.mxu0 0.0
    %649 = vmatpush1.msra.mxu0 %v617
    %650 = vmatprep.subr.mxu0 0.0
    %651 = vmatpush1.msra.mxu0 %v616
    %652 = vmatprep.subr.mxu0 0.0
    %653 = vmatpush1.msra.mxu0 %v615
    %654 = vmatprep.subr.mxu0 0.0
    %655 = vmatpush1.msra.mxu0 %v614
    %656 = vmatprep.subr.mxu0 0.0
    %657 = vmatpush1.msra.mxu0 %v613
    %658 = vmatprep.subr.mxu0 0.0
    %659 = vmatpush1.msra.mxu0 %v612
    %660 = vmatprep.subr.mxu0 0.0
    %661 = vmatpush2.msra.mxu0 0.0
    %662 = vmatprep.subr.mxu0 0.0
    %663 = vmatpush2.msra.mxu0 0.0
    %664 = vmatprep.subr.mxu0 0.0
    %665 = vmatpush2.msra.mxu0 0.0
    %666 = vmatprep.subr.mxu0 0.0
    %667 = vmatpush2.msra.mxu0 0.0
    %668 = vmatprep.subr.mxu0 0.0
    %669 = vmatpush2.msra.mxu0 0.0
    %670 = vmatprep.subr.mxu0 0.0
    %671 = vmatpush2.msra.mxu0 0.0
    %672 = vmatprep.subr.mxu0 0.0
    %673 = vmatpush2.msra.mxu0 0.0
    %674 = vmatprep.subr.mxu0 0.0
    %675 = vmatpush2.msra.mxu0 0.0
    %676 = vmatprep.subr.mxu0 0.0
    %677 = vmatpush2.msra.mxu0 0.0
    %678 = vmatprep.subr.mxu0 0.0
    %679 = vmatpush2.msra.mxu0 0.0
    %680 = vmatprep.subr.mxu0 0.0
    %681 = vmatpush2.msra.mxu0 0.0
    %682 = vmatprep.subr.mxu0 0.0
    %683 = vmatpush2.msra.mxu0 0.0
    %684 = vmatprep.subr.mxu0 0.0
    %685 = vmatpush2.msra.mxu0 0.0
    %686 = vmatprep.subr.mxu0 0.0
    %687 = vmatpush2.msra.mxu0 0.0
    %688 = vmatprep.subr.mxu0 0.0
    %689 = vmatpush2.msra.mxu0 0.0
    %690 = vmatprep.subr.mxu0 0.0
    %691 = vmatpush2.msra.mxu0 0.0
    %692 = vmatprep.mubr.f32.mxu0 0.0
    %693 = vmatmul.mubr.f32.gmra.mxu0 %v607
    %v694 = vpop.f32.mrf.mxu0
    %v695 = vadd.f32 0.0, %v694
    %v696 = vpop.f32.mrf.mxu0
    %697 = vdwg.mxu0
    %v698 = vadd.f32 %v535, %v695
    %s699 = sadd.s32 0, 4
    %s700 = smul.u32 %s699, 2
    %s701 = scalar_lea.vmem %s0, %s700
    %v702 = vld [vmem:[%s701] sm:$0x3]
    %703 = vmatprep.subr.mxu0 0.0
    %704 = vmatpush1.msra.mxu0 %v42
    %705 = vmatprep.subr.mxu0 0.0
    %706 = vmatpush1.msra.mxu0 %v41
    %707 = vmatprep.subr.mxu0 0.0
    %708 = vmatpush1.msra.mxu0 %v40
    %709 = vmatprep.subr.mxu0 0.0
    %710 = vmatpush1.msra.mxu0 %v39
    %711 = vmatprep.subr.mxu0 0.0
    %712 = vmatpush1.msra.mxu0 %v38
    %713 = vmatprep.subr.mxu0 0.0
    %714 = vmatpush1.msra.mxu0 %v37
    %715 = vmatprep.subr.mxu0 0.0
    %716 = vmatpush1.msra.mxu0 %v36
    %717 = vmatprep.subr.mxu0 0.0
    %718 = vmatpush1.msra.mxu0 %v35
    %719 = vmatprep.subr.mxu0 0.0
    %720 = vmatpush1.msra.mxu0 %v34
    %721 = vmatprep.subr.mxu0 0.0
    %722 = vmatpush1.msra.mxu0 %v33
    %723 = vmatprep.subr.mxu0 0.0
    %724 = vmatpush1.msra.mxu0 %v32
    %725 = vmatprep.subr.mxu0 0.0
    %726 = vmatpush1.msra.mxu0 %v31
    %727 = vmatprep.subr.mxu0 0.0
    %728 = vmatpush1.msra.mxu0 %v30
    %729 = vmatprep.subr.mxu0 0.0
    %730 = vmatpush1.msra.mxu0 %v29
    %731 = vmatprep.subr.mxu0 0.0
    %732 = vmatpush1.msra.mxu0 %v28
    %733 = vmatprep.subr.mxu0 0.0
    %734 = vmatpush1.msra.mxu0 %v27
    %735 = vmatprep.subr.mxu0 0.0
    %736 = vmatpush2.msra.mxu0 0.0
    %737 = vmatprep.subr.mxu0 0.0
    %738 = vmatpush2.msra.mxu0 0.0
    %739 = vmatprep.subr.mxu0 0.0
    %740 = vmatpush2.msra.mxu0 0.0
    %741 = vmatprep.subr.mxu0 0.0
    %742 = vmatpush2.msra.mxu0 0.0
    %743 = vmatprep.subr.mxu0 0.0
    %744 = vmatpush2.msra.mxu0 0.0
    %745 = vmatprep.subr.mxu0 0.0
    %746 = vmatpush2.msra.mxu0 0.0
    %747 = vmatprep.subr.mxu0 0.0
    %748 = vmatpush2.msra.mxu0 0.0
    %749 = vmatprep.subr.mxu0 0.0
    %750 = vmatpush2.msra.mxu0 0.0
    %751 = vmatprep.subr.mxu0 0.0
    %752 = vmatpush2.msra.mxu0 0.0
    %753 = vmatprep.subr.mxu0 0.0
    %754 = vmatpush2.msra.mxu0 0.0
    %755 = vmatprep.subr.mxu0 0.0
    %756 = vmatpush2.msra.mxu0 0.0
    %757 = vmatprep.subr.mxu0 0.0
    %758 = vmatpush2.msra.mxu0 0.0
    %759 = vmatprep.subr.mxu0 0.0
    %760 = vmatpush2.msra.mxu0 0.0
    %761 = vmatprep.subr.mxu0 0.0
    %762 = vmatpush2.msra.mxu0 0.0
    %763 = vmatprep.subr.mxu0 0.0
    %764 = vmatpush2.msra.mxu0 0.0
    %765 = vmatprep.subr.mxu0 0.0
    %766 = vmatpush2.msra.mxu0 0.0
    %767 = vmatprep.mubr.f32.mxu0 0.0
    %768 = vmatmul.mubr.f32.gmra.mxu0 %v702
    %v769 = vpop.f32.mrf.mxu0
    %v770 = vadd.f32 %v51, %v769
    %v771 = vpop.f32.mrf.mxu0
    %772 = vdwg.mxu0
    %s773 = smul.u32 %s699, 128
    %s774 = scalar_lea.vmem %s3, %s773
    %v775 = vld [vmem:[%s774] sm:$0xff]
    %v776 = vld [vmem:[%s774 + $0x8] sm:$0xff]
    %v777 = vld [vmem:[%s774 + $0x10] sm:$0xff]
    %v778 = vld [vmem:[%s774 + $0x18] sm:$0xff]
    %v779 = vld [vmem:[%s774 + $0x20] sm:$0xff]
    %v780 = vld [vmem:[%s774 + $0x28] sm:$0xff]
    %v781 = vld [vmem:[%s774 + $0x30] sm:$0xff]
    %v782 = vld [vmem:[%s774 + $0x38] sm:$0xff]
    %v783 = vld [vmem:[%s774 + $0x40] sm:$0xff]
    %v784 = vld [vmem:[%s774 + $0x48] sm:$0xff]
    %v785 = vld [vmem:[%s774 + $0x50] sm:$0xff]
    %v786 = vld [vmem:[%s774 + $0x58] sm:$0xff]
    %v787 = vld [vmem:[%s774 + $0x60] sm:$0xff]
    %v788 = vld [vmem:[%s774 + $0x68] sm:$0xff]
    %v789 = vld [vmem:[%s774 + $0x70] sm:$0xff]
    %v790 = vld [vmem:[%s774 + $0x78] sm:$0xff]
    %791 = vmatprep.subr.mxu0 0.0
    %792 = vmatpush1.msra.mxu0 %v790
    %793 = vmatprep.subr.mxu0 0.0
    %794 = vmatpush1.msra.mxu0 %v789
    %795 = vmatprep.subr.mxu0 0.0
    %796 = vmatpush1.msra.mxu0 %v788
    %797 = vmatprep.subr.mxu0 0.0
    %798 = vmatpush1.msra.mxu0 %v787
    %799 = vmatprep.subr.mxu0 0.0
    %800 = vmatpush1.msra.mxu0 %v786
    %801 = vmatprep.subr.mxu0 0.0
    %802 = vmatpush1.msra.mxu0 %v785
    %803 = vmatprep.subr.mxu0 0.0
    %804 = vmatpush1.msra.mxu0 %v784
    %805 = vmatprep.subr.mxu0 0.0
    %806 = vmatpush1.msra.mxu0 %v783
    %807 = vmatprep.subr.mxu0 0.0
    %808 = vmatpush1.msra.mxu0 %v782
    %809 = vmatprep.subr.mxu0 0.0
    %810 = vmatpush1.msra.mxu0 %v781
    %811 = vmatprep.subr.mxu0 0.0
    %812 = vmatpush1.msra.mxu0 %v780
    %813 = vmatprep.subr.mxu0 0.0
    %814 = vmatpush1.msra.mxu0 %v779
    %815 = vmatprep.subr.mxu0 0.0
    %816 = vmatpush1.msra.mxu0 %v778
    %817 = vmatprep.subr.mxu0 0.0
    %818 = vmatpush1.msra.mxu0 %v777
    %819 = vmatprep.subr.mxu0 0.0
    %820 = vmatpush1.msra.mxu0 %v776
    %821 = vmatprep.subr.mxu0 0.0
    %822 = vmatpush1.msra.mxu0 %v775
    %823 = vmatprep.subr.mxu0 0.0
    %824 = vmatpush2.msra.mxu0 0.0
    %825 = vmatprep.subr.mxu0 0.0
    %826 = vmatpush2.msra.mxu0 0.0
    %827 = vmatprep.subr.mxu0 0.0
    %828 = vmatpush2.msra.mxu0 0.0
    %829 = vmatprep.subr.mxu0 0.0
    %830 = vmatpush2.msra.mxu0 0.0
    %831 = vmatprep.subr.mxu0 0.0
    %832 = vmatpush2.msra.mxu0 0.0
    %833 = vmatprep.subr.mxu0 0.0
    %834 = vmatpush2.msra.mxu0 0.0
    %835 = vmatprep.subr.mxu0 0.0
    %836 = vmatpush2.msra.mxu0 0.0
    %837 = vmatprep.subr.mxu0 0.0
    %838 = vmatpush2.msra.mxu0 0.0
    %839 = vmatprep.subr.mxu0 0.0
    %840 = vmatpush2.msra.mxu0 0.0
    %841 = vmatprep.subr.mxu0 0.0
    %842 = vmatpush2.msra.mxu0 0.0
    %843 = vmatprep.subr.mxu0 0.0
    %844 = vmatpush2.msra.mxu0 0.0
    %845 = vmatprep.subr.mxu0 0.0
    %846 = vmatpush2.msra.mxu0 0.0
    %847 = vmatprep.subr.mxu0 0.0
    %848 = vmatpush2.msra.mxu0 0.0
    %849 = vmatprep.subr.mxu0 0.0
    %850 = vmatpush2.msra.mxu0 0.0
    %851 = vmatprep.subr.mxu0 0.0
    %852 = vmatpush2.msra.mxu0 0.0
    %853 = vmatprep.subr.mxu0 0.0
    %854 = vmatpush2.msra.mxu0 0.0
    %855 = vmatprep.mubr.f32.mxu0 0.0
    %856 = vmatmul.mubr.f32.gmra.mxu0 %v770
    %v857 = vpop.f32.mrf.mxu0
    %v858 = vadd.f32 0.0, %v857
    %v859 = vpop.f32.mrf.mxu0
    %860 = vdwg.mxu0
    %v861 = vadd.f32 %v698, %v858
    %s862 = sadd.s32 0, 5
    %s863 = smul.u32 %s862, 2
    %s864 = scalar_lea.vmem %s0, %s863
    %v865 = vld [vmem:[%s864] sm:$0x3]
    %866 = vmatprep.subr.mxu0 0.0
    %867 = vmatpush1.msra.mxu0 %v42
    %868 = vmatprep.subr.mxu0 0.0
    %869 = vmatpush1.msra.mxu0 %v41
    %870 = vmatprep.subr.mxu0 0.0
    %871 = vmatpush1.msra.mxu0 %v40
    %872 = vmatprep.subr.mxu0 0.0
    %873 = vmatpush1.msra.mxu0 %v39
    %874 = vmatprep.subr.mxu0 0.0
    %875 = vmatpush1.msra.mxu0 %v38
    %876 = vmatprep.subr.mxu0 0.0
    %877 = vmatpush1.msra.mxu0 %v37
    %878 = vmatprep.subr.mxu0 0.0
    %879 = vmatpush1.msra.mxu0 %v36
    %880 = vmatprep.subr.mxu0 0.0
    %881 = vmatpush1.msra.mxu0 %v35
    %882 = vmatprep.subr.mxu0 0.0
    %883 = vmatpush1.msra.mxu0 %v34
    %884 = vmatprep.subr.mxu0 0.0
    %885 = vmatpush1.msra.mxu0 %v33
    %886 = vmatprep.subr.mxu0 0.0
    %887 = vmatpush1.msra.mxu0 %v32
    %888 = vmatprep.subr.mxu0 0.0
    %889 = vmatpush1.msra.mxu0 %v31
    %890 = vmatprep.subr.mxu0 0.0
    %891 = vmatpush1.msra.mxu0 %v30
    %892 = vmatprep.subr.mxu0 0.0
    %893 = vmatpush1.msra.mxu0 %v29
    %894 = vmatprep.subr.mxu0 0.0
    %895 = vmatpush1.msra.mxu0 %v28
    %896 = vmatprep.subr.mxu0 0.0
    %897 = vmatpush1.msra.mxu0 %v27
    %898 = vmatprep.subr.mxu0 0.0
    %899 = vmatpush2.msra.mxu0 0.0
    %900 = vmatprep.subr.mxu0 0.0
    %901 = vmatpush2.msra.mxu0 0.0
    %902 = vmatprep.subr.mxu0 0.0
    %903 = vmatpush2.msra.mxu0 0.0
    %904 = vmatprep.subr.mxu0 0.0
    %905 = vmatpush2.msra.mxu0 0.0
    %906 = vmatprep.subr.mxu0 0.0
    %907 = vmatpush2.msra.mxu0 0.0
    %908 = vmatprep.subr.mxu0 0.0
    %909 = vmatpush2.msra.mxu0 0.0
    %910 = vmatprep.subr.mxu0 0.0
    %911 = vmatpush2.msra.mxu0 0.0
    %912 = vmatprep.subr.mxu0 0.0
    %913 = vmatpush2.msra.mxu0 0.0
    %914 = vmatprep.subr.mxu0 0.0
    %915 = vmatpush2.msra.mxu0 0.0
    %916 = vmatprep.subr.mxu0 0.0
    %917 = vmatpush2.msra.mxu0 0.0
    %918 = vmatprep.subr.mxu0 0.0
    %919 = vmatpush2.msra.mxu0 0.0
    %920 = vmatprep.subr.mxu0 0.0
    %921 = vmatpush2.msra.mxu0 0.0
    %922 = vmatprep.subr.mxu0 0.0
    %923 = vmatpush2.msra.mxu0 0.0
    %924 = vmatprep.subr.mxu0 0.0
    %925 = vmatpush2.msra.mxu0 0.0
    %926 = vmatprep.subr.mxu0 0.0
    %927 = vmatpush2.msra.mxu0 0.0
    %928 = vmatprep.subr.mxu0 0.0
    %929 = vmatpush2.msra.mxu0 0.0
    %930 = vmatprep.mubr.f32.mxu0 0.0
    %931 = vmatmul.mubr.f32.gmra.mxu0 %v865
    %v932 = vpop.f32.mrf.mxu0
    %v933 = vadd.f32 %v51, %v932
    %v934 = vpop.f32.mrf.mxu0
    %935 = vdwg.mxu0
    %s936 = smul.u32 %s862, 128
    %s937 = scalar_lea.vmem %s3, %s936
    %v938 = vld [vmem:[%s937] sm:$0xff]
    %v939 = vld [vmem:[%s937 + $0x8] sm:$0xff]
    %v940 = vld [vmem:[%s937 + $0x10] sm:$0xff]
    %v941 = vld [vmem:[%s937 + $0x18] sm:$0xff]
    %v942 = vld [vmem:[%s937 + $0x20] sm:$0xff]
    %v943 = vld [vmem:[%s937 + $0x28] sm:$0xff]
    %v944 = vld [vmem:[%s937 + $0x30] sm:$0xff]
    %v945 = vld [vmem:[%s937 + $0x38] sm:$0xff]
    %v946 = vld [vmem:[%s937 + $0x40] sm:$0xff]
    %v947 = vld [vmem:[%s937 + $0x48] sm:$0xff]
    %v948 = vld [vmem:[%s937 + $0x50] sm:$0xff]
    %v949 = vld [vmem:[%s937 + $0x58] sm:$0xff]
    %v950 = vld [vmem:[%s937 + $0x60] sm:$0xff]
    %v951 = vld [vmem:[%s937 + $0x68] sm:$0xff]
    %v952 = vld [vmem:[%s937 + $0x70] sm:$0xff]
    %v953 = vld [vmem:[%s937 + $0x78] sm:$0xff]
    %954 = vmatprep.subr.mxu0 0.0
    %955 = vmatpush1.msra.mxu0 %v953
    %956 = vmatprep.subr.mxu0 0.0
    %957 = vmatpush1.msra.mxu0 %v952
    %958 = vmatprep.subr.mxu0 0.0
    %959 = vmatpush1.msra.mxu0 %v951
    %960 = vmatprep.subr.mxu0 0.0
    %961 = vmatpush1.msra.mxu0 %v950
    %962 = vmatprep.subr.mxu0 0.0
    %963 = vmatpush1.msra.mxu0 %v949
    %964 = vmatprep.subr.mxu0 0.0
    %965 = vmatpush1.msra.mxu0 %v948
    %966 = vmatprep.subr.mxu0 0.0
    %967 = vmatpush1.msra.mxu0 %v947
    %968 = vmatprep.subr.mxu0 0.0
    %969 = vmatpush1.msra.mxu0 %v946
    %970 = vmatprep.subr.mxu0 0.0
    %971 = vmatpush1.msra.mxu0 %v945
    %972 = vmatprep.subr.mxu0 0.0
    %973 = vmatpush1.msra.mxu0 %v944
    %974 = vmatprep.subr.mxu0 0.0
    %975 = vmatpush1.msra.mxu0 %v943
    %976 = vmatprep.subr.mxu0 0.0
    %977 = vmatpush1.msra.mxu0 %v942
    %978 = vmatprep.subr.mxu0 0.0
    %979 = vmatpush1.msra.mxu0 %v941
    %980 = vmatprep.subr.mxu0 0.0
    %981 = vmatpush1.msra.mxu0 %v940
    %982 = vmatprep.subr.mxu0 0.0
    %983 = vmatpush1.msra.mxu0 %v939
    %984 = vmatprep.subr.mxu0 0.0
    %985 = vmatpush1.msra.mxu0 %v938
    %986 = vmatprep.subr.mxu0 0.0
    %987 = vmatpush2.msra.mxu0 0.0
    %988 = vmatprep.subr.mxu0 0.0
    %989 = vmatpush2.msra.mxu0 0.0
    %990 = vmatprep.subr.mxu0 0.0
    %991 = vmatpush2.msra.mxu0 0.0
    %992 = vmatprep.subr.mxu0 0.0
    %993 = vmatpush2.msra.mxu0 0.0
    %994 = vmatprep.subr.mxu0 0.0
    %995 = vmatpush2.msra.mxu0 0.0
    %996 = vmatprep.subr.mxu0 0.0
    %997 = vmatpush2.msra.mxu0 0.0
    %998 = vmatprep.subr.mxu0 0.0
    %999 = vmatpush2.msra.mxu0 0.0
    %1000 = vmatprep.subr.mxu0 0.0
    %1001 = vmatpush2.msra.mxu0 0.0
    %1002 = vmatprep.subr.mxu0 0.0
    %1003 = vmatpush2.msra.mxu0 0.0
    %1004 = vmatprep.subr.mxu0 0.0
    %1005 = vmatpush2.msra.mxu0 0.0
    %1006 = vmatprep.subr.mxu0 0.0
    %1007 = vmatpush2.msra.mxu0 0.0
    %1008 = vmatprep.subr.mxu0 0.0
    %1009 = vmatpush2.msra.mxu0 0.0
    %1010 = vmatprep.subr.mxu0 0.0
    %1011 = vmatpush2.msra.mxu0 0.0
    %1012 = vmatprep.subr.mxu0 0.0
    %1013 = vmatpush2.msra.mxu0 0.0
    %1014 = vmatprep.subr.mxu0 0.0
    %1015 = vmatpush2.msra.mxu0 0.0
    %1016 = vmatprep.subr.mxu0 0.0
    %1017 = vmatpush2.msra.mxu0 0.0
    %1018 = vmatprep.mubr.f32.mxu0 0.0
    %1019 = vmatmul.mubr.f32.gmra.mxu0 %v933
    %v1020 = vpop.f32.mrf.mxu0
    %v1021 = vadd.f32 0.0, %v1020
    %v1022 = vpop.f32.mrf.mxu0
    %1023 = vdwg.mxu0
    %v1024 = vadd.f32 %v861, %v1021
    %s1025 = sadd.s32 0, 6
    %s1026 = smul.u32 %s1025, 2
    %s1027 = scalar_lea.vmem %s0, %s1026
    %v1028 = vld [vmem:[%s1027] sm:$0x3]
    %1029 = vmatprep.subr.mxu0 0.0
    %1030 = vmatpush1.msra.mxu0 %v42
    %1031 = vmatprep.subr.mxu0 0.0
    %1032 = vmatpush1.msra.mxu0 %v41
    %1033 = vmatprep.subr.mxu0 0.0
    %1034 = vmatpush1.msra.mxu0 %v40
    %1035 = vmatprep.subr.mxu0 0.0
    %1036 = vmatpush1.msra.mxu0 %v39
    %1037 = vmatprep.subr.mxu0 0.0
    %1038 = vmatpush1.msra.mxu0 %v38
    %1039 = vmatprep.subr.mxu0 0.0
    %1040 = vmatpush1.msra.mxu0 %v37
    %1041 = vmatprep.subr.mxu0 0.0
    %1042 = vmatpush1.msra.mxu0 %v36
    %1043 = vmatprep.subr.mxu0 0.0
    %1044 = vmatpush1.msra.mxu0 %v35
    %1045 = vmatprep.subr.mxu0 0.0
    %1046 = vmatpush1.msra.mxu0 %v34
    %1047 = vmatprep.subr.mxu0 0.0
    %1048 = vmatpush1.msra.mxu0 %v33
    %1049 = vmatprep.subr.mxu0 0.0
    %1050 = vmatpush1.msra.mxu0 %v32
    %1051 = vmatprep.subr.mxu0 0.0
    %1052 = vmatpush1.msra.mxu0 %v31
    %1053 = vmatprep.subr.mxu0 0.0
    %1054 = vmatpush1.msra.mxu0 %v30
    %1055 = vmatprep.subr.mxu0 0.0
    %1056 = vmatpush1.msra.mxu0 %v29
    %1057 = vmatprep.subr.mxu0 0.0
    %1058 = vmatpush1.msra.mxu0 %v28
    %1059 = vmatprep.subr.mxu0 0.0
    %1060 = vmatpush1.msra.mxu0 %v27
    %1061 = vmatprep.subr.mxu0 0.0
    %1062 = vmatpush2.msra.mxu0 0.0
    %1063 = vmatprep.subr.mxu0 0.0
    %1064 = vmatpush2.msra.mxu0 0.0
    %1065 = vmatprep.subr.mxu0 0.0
    %1066 = vmatpush2.msra.mxu0 0.0
    %1067 = vmatprep.subr.mxu0 0.0
    %1068 = vmatpush2.msra.mxu0 0.0
    %1069 = vmatprep.subr.mxu0 0.0
    %1070 = vmatpush2.msra.mxu0 0.0
    %1071 = vmatprep.subr.mxu0 0.0
    %1072 = vmatpush2.msra.mxu0 0.0
    %1073 = vmatprep.subr.mxu0 0.0
    %1074 = vmatpush2.msra.mxu0 0.0
    %1075 = vmatprep.subr.mxu0 0.0
    %1076 = vmatpush2.msra.mxu0 0.0
    %1077 = vmatprep.subr.mxu0 0.0
    %1078 = vmatpush2.msra.mxu0 0.0
    %1079 = vmatprep.subr.mxu0 0.0
    %1080 = vmatpush2.msra.mxu0 0.0
    %1081 = vmatprep.subr.mxu0 0.0
    %1082 = vmatpush2.msra.mxu0 0.0
    %1083 = vmatprep.subr.mxu0 0.0
    %1084 = vmatpush2.msra.mxu0 0.0
    %1085 = vmatprep.subr.mxu0 0.0
    %1086 = vmatpush2.msra.mxu0 0.0
    %1087 = vmatprep.subr.mxu0 0.0
    %1088 = vmatpush2.msra.mxu0 0.0
    %1089 = vmatprep.subr.mxu0 0.0
    %1090 = vmatpush2.msra.mxu0 0.0
    %1091 = vmatprep.subr.mxu0 0.0
    %1092 = vmatpush2.msra.mxu0 0.0
    %1093 = vmatprep.mubr.f32.mxu0 0.0
    %1094 = vmatmul.mubr.f32.gmra.mxu0 %v1028
    %v1095 = vpop.f32.mrf.mxu0
    %v1096 = vadd.f32 %v51, %v1095
    %v1097 = vpop.f32.mrf.mxu0
    %1098 = vdwg.mxu0
    %s1099 = smul.u32 %s1025, 128
    %s1100 = scalar_lea.vmem %s3, %s1099
    %v1101 = vld [vmem:[%s1100] sm:$0xff]
    %v1102 = vld [vmem:[%s1100 + $0x8] sm:$0xff]
    %v1103 = vld [vmem:[%s1100 + $0x10] sm:$0xff]
    %v1104 = vld [vmem:[%s1100 + $0x18] sm:$0xff]
    %v1105 = vld [vmem:[%s1100 + $0x20] sm:$0xff]
    %v1106 = vld [vmem:[%s1100 + $0x28] sm:$0xff]
    %v1107 = vld [vmem:[%s1100 + $0x30] sm:$0xff]
    %v1108 = vld [vmem:[%s1100 + $0x38] sm:$0xff]
    %v1109 = vld [vmem:[%s1100 + $0x40] sm:$0xff]
    %v1110 = vld [vmem:[%s1100 + $0x48] sm:$0xff]
    %v1111 = vld [vmem:[%s1100 + $0x50] sm:$0xff]
    %v1112 = vld [vmem:[%s1100 + $0x58] sm:$0xff]
    %v1113 = vld [vmem:[%s1100 + $0x60] sm:$0xff]
    %v1114 = vld [vmem:[%s1100 + $0x68] sm:$0xff]
    %v1115 = vld [vmem:[%s1100 + $0x70] sm:$0xff]
    %v1116 = vld [vmem:[%s1100 + $0x78] sm:$0xff]
    %1117 = vmatprep.subr.mxu0 0.0
    %1118 = vmatpush1.msra.mxu0 %v1116
    %1119 = vmatprep.subr.mxu0 0.0
    %1120 = vmatpush1.msra.mxu0 %v1115
    %1121 = vmatprep.subr.mxu0 0.0
    %1122 = vmatpush1.msra.mxu0 %v1114
    %1123 = vmatprep.subr.mxu0 0.0
    %1124 = vmatpush1.msra.mxu0 %v1113
    %1125 = vmatprep.subr.mxu0 0.0
    %1126 = vmatpush1.msra.mxu0 %v1112
    %1127 = vmatprep.subr.mxu0 0.0
    %1128 = vmatpush1.msra.mxu0 %v1111
    %1129 = vmatprep.subr.mxu0 0.0
    %1130 = vmatpush1.msra.mxu0 %v1110
    %1131 = vmatprep.subr.mxu0 0.0
    %1132 = vmatpush1.msra.mxu0 %v1109
    %1133 = vmatprep.subr.mxu0 0.0
    %1134 = vmatpush1.msra.mxu0 %v1108
    %1135 = vmatprep.subr.mxu0 0.0
    %1136 = vmatpush1.msra.mxu0 %v1107
    %1137 = vmatprep.subr.mxu0 0.0
    %1138 = vmatpush1.msra.mxu0 %v1106
    %1139 = vmatprep.subr.mxu0 0.0
    %1140 = vmatpush1.msra.mxu0 %v1105
    %1141 = vmatprep.subr.mxu0 0.0
    %1142 = vmatpush1.msra.mxu0 %v1104
    %1143 = vmatprep.subr.mxu0 0.0
    %1144 = vmatpush1.msra.mxu0 %v1103
    %1145 = vmatprep.subr.mxu0 0.0
    %1146 = vmatpush1.msra.mxu0 %v1102
    %1147 = vmatprep.subr.mxu0 0.0
    %1148 = vmatpush1.msra.mxu0 %v1101
    %1149 = vmatprep.subr.mxu0 0.0
    %1150 = vmatpush2.msra.mxu0 0.0
    %1151 = vmatprep.subr.mxu0 0.0
    %1152 = vmatpush2.msra.mxu0 0.0
    %1153 = vmatprep.subr.mxu0 0.0
    %1154 = vmatpush2.msra.mxu0 0.0
    %1155 = vmatprep.subr.mxu0 0.0
    %1156 = vmatpush2.msra.mxu0 0.0
    %1157 = vmatprep.subr.mxu0 0.0
    %1158 = vmatpush2.msra.mxu0 0.0
    %1159 = vmatprep.subr.mxu0 0.0
    %1160 = vmatpush2.msra.mxu0 0.0
    %1161 = vmatprep.subr.mxu0 0.0
    %1162 = vmatpush2.msra.mxu0 0.0
    %1163 = vmatprep.subr.mxu0 0.0
    %1164 = vmatpush2.msra.mxu0 0.0
    %1165 = vmatprep.subr.mxu0 0.0
    %1166 = vmatpush2.msra.mxu0 0.0
    %1167 = vmatprep.subr.mxu0 0.0
    %1168 = vmatpush2.msra.mxu0 0.0
    %1169 = vmatprep.subr.mxu0 0.0
    %1170 = vmatpush2.msra.mxu0 0.0
    %1171 = vmatprep.subr.mxu0 0.0
    %1172 = vmatpush2.msra.mxu0 0.0
    %1173 = vmatprep.subr.mxu0 0.0
    %1174 = vmatpush2.msra.mxu0 0.0
    %1175 = vmatprep.subr.mxu0 0.0
    %1176 = vmatpush2.msra.mxu0 0.0
    %1177 = vmatprep.subr.mxu0 0.0
    %1178 = vmatpush2.msra.mxu0 0.0
    %1179 = vmatprep.subr.mxu0 0.0
    %1180 = vmatpush2.msra.mxu0 0.0
    %1181 = vmatprep.mubr.f32.mxu0 0.0
    %1182 = vmatmul.mubr.f32.gmra.mxu0 %v1096
    %v1183 = vpop.f32.mrf.mxu0
    %v1184 = vadd.f32 0.0, %v1183
    %v1185 = vpop.f32.mrf.mxu0
    %1186 = vdwg.mxu0
    %v1187 = vadd.f32 %v1024, %v1184
    %s1188 = sadd.s32 0, 7
    %s1189 = smul.u32 %s1188, 2
    %s1190 = scalar_lea.vmem %s0, %s1189
    %v1191 = vld [vmem:[%s1190] sm:$0x3]
    %1192 = vmatprep.subr.mxu0 0.0
    %1193 = vmatpush1.msra.mxu0 %v42
    %1194 = vmatprep.subr.mxu0 0.0
    %1195 = vmatpush1.msra.mxu0 %v41
    %1196 = vmatprep.subr.mxu0 0.0
    %1197 = vmatpush1.msra.mxu0 %v40
    %1198 = vmatprep.subr.mxu0 0.0
    %1199 = vmatpush1.msra.mxu0 %v39
    %1200 = vmatprep.subr.mxu0 0.0
    %1201 = vmatpush1.msra.mxu0 %v38
    %1202 = vmatprep.subr.mxu0 0.0
    %1203 = vmatpush1.msra.mxu0 %v37
    %1204 = vmatprep.subr.mxu0 0.0
    %1205 = vmatpush1.msra.mxu0 %v36
    %1206 = vmatprep.subr.mxu0 0.0
    %1207 = vmatpush1.msra.mxu0 %v35
    %1208 = vmatprep.subr.mxu0 0.0
    %1209 = vmatpush1.msra.mxu0 %v34
    %1210 = vmatprep.subr.mxu0 0.0
    %1211 = vmatpush1.msra.mxu0 %v33
    %1212 = vmatprep.subr.mxu0 0.0
    %1213 = vmatpush1.msra.mxu0 %v32
    %1214 = vmatprep.subr.mxu0 0.0
    %1215 = vmatpush1.msra.mxu0 %v31
    %1216 = vmatprep.subr.mxu0 0.0
    %1217 = vmatpush1.msra.mxu0 %v30
    %1218 = vmatprep.subr.mxu0 0.0
    %1219 = vmatpush1.msra.mxu0 %v29
    %1220 = vmatprep.subr.mxu0 0.0
    %1221 = vmatpush1.msra.mxu0 %v28
    %1222 = vmatprep.subr.mxu0 0.0
    %1223 = vmatpush1.msra.mxu0 %v27
    %1224 = vmatprep.subr.mxu0 0.0
    %1225 = vmatpush2.msra.mxu0 0.0
    %1226 = vmatprep.subr.mxu0 0.0
    %1227 = vmatpush2.msra.mxu0 0.0
    %1228 = vmatprep.subr.mxu0 0.0
    %1229 = vmatpush2.msra.mxu0 0.0
    %1230 = vmatprep.subr.mxu0 0.0
    %1231 = vmatpush2.msra.mxu0 0.0
    %1232 = vmatprep.subr.mxu0 0.0
    %1233 = vmatpush2.msra.mxu0 0.0
    %1234 = vmatprep.subr.mxu0 0.0
    %1235 = vmatpush2.msra.mxu0 0.0
    %1236 = vmatprep.subr.mxu0 0.0
    %1237 = vmatpush2.msra.mxu0 0.0
    %1238 = vmatprep.subr.mxu0 0.0
    %1239 = vmatpush2.msra.mxu0 0.0
    %1240 = vmatprep.subr.mxu0 0.0
    %1241 = vmatpush2.msra.mxu0 0.0
    %1242 = vmatprep.subr.mxu0 0.0
    %1243 = vmatpush2.msra.mxu0 0.0
    %1244 = vmatprep.subr.mxu0 0.0
    %1245 = vmatpush2.msra.mxu0 0.0
    %1246 = vmatprep.subr.mxu0 0.0
    %1247 = vmatpush2.msra.mxu0 0.0
    %1248 = vmatprep.subr.mxu0 0.0
    %1249 = vmatpush2.msra.mxu0 0.0
    %1250 = vmatprep.subr.mxu0 0.0
    %1251 = vmatpush2.msra.mxu0 0.0
    %1252 = vmatprep.subr.mxu0 0.0
    %1253 = vmatpush2.msra.mxu0 0.0
    %1254 = vmatprep.subr.mxu0 0.0
    %1255 = vmatpush2.msra.mxu0 0.0
    %1256 = vmatprep.mubr.f32.mxu0 0.0
    %1257 = vmatmul.mubr.f32.gmra.mxu0 %v1191
    %v1258 = vpop.f32.mrf.mxu0
    %v1259 = vadd.f32 %v51, %v1258
    %v1260 = vpop.f32.mrf.mxu0
    %1261 = vdwg.mxu0
    %s1262 = smul.u32 %s1188, 128
    %s1263 = scalar_lea.vmem %s3, %s1262
    %v1264 = vld [vmem:[%s1263] sm:$0xff]
    %v1265 = vld [vmem:[%s1263 + $0x8] sm:$0xff]
    %v1266 = vld [vmem:[%s1263 + $0x10] sm:$0xff]
    %v1267 = vld [vmem:[%s1263 + $0x18] sm:$0xff]
    %v1268 = vld [vmem:[%s1263 + $0x20] sm:$0xff]
    %v1269 = vld [vmem:[%s1263 + $0x28] sm:$0xff]
    %v1270 = vld [vmem:[%s1263 + $0x30] sm:$0xff]
    %v1271 = vld [vmem:[%s1263 + $0x38] sm:$0xff]
    %v1272 = vld [vmem:[%s1263 + $0x40] sm:$0xff]
    %v1273 = vld [vmem:[%s1263 + $0x48] sm:$0xff]
    %v1274 = vld [vmem:[%s1263 + $0x50] sm:$0xff]
    %v1275 = vld [vmem:[%s1263 + $0x58] sm:$0xff]
    %v1276 = vld [vmem:[%s1263 + $0x60] sm:$0xff]
    %v1277 = vld [vmem:[%s1263 + $0x68] sm:$0xff]
    %v1278 = vld [vmem:[%s1263 + $0x70] sm:$0xff]
    %v1279 = vld [vmem:[%s1263 + $0x78] sm:$0xff]
    %1280 = vmatprep.subr.mxu0 0.0
    %1281 = vmatpush1.msra.mxu0 %v1279
    %1282 = vmatprep.subr.mxu0 0.0
    %1283 = vmatpush1.msra.mxu0 %v1278
    %1284 = vmatprep.subr.mxu0 0.0
    %1285 = vmatpush1.msra.mxu0 %v1277
    %1286 = vmatprep.subr.mxu0 0.0
    %1287 = vmatpush1.msra.mxu0 %v1276
    %1288 = vmatprep.subr.mxu0 0.0
    %1289 = vmatpush1.msra.mxu0 %v1275
    %1290 = vmatprep.subr.mxu0 0.0
    %1291 = vmatpush1.msra.mxu0 %v1274
    %1292 = vmatprep.subr.mxu0 0.0
    %1293 = vmatpush1.msra.mxu0 %v1273
    %1294 = vmatprep.subr.mxu0 0.0
    %1295 = vmatpush1.msra.mxu0 %v1272
    %1296 = vmatprep.subr.mxu0 0.0
    %1297 = vmatpush1.msra.mxu0 %v1271
    %1298 = vmatprep.subr.mxu0 0.0
    %1299 = vmatpush1.msra.mxu0 %v1270
    %1300 = vmatprep.subr.mxu0 0.0
    %1301 = vmatpush1.msra.mxu0 %v1269
    %1302 = vmatprep.subr.mxu0 0.0
    %1303 = vmatpush1.msra.mxu0 %v1268
    %1304 = vmatprep.subr.mxu0 0.0
    %1305 = vmatpush1.msra.mxu0 %v1267
    %1306 = vmatprep.subr.mxu0 0.0
    %1307 = vmatpush1.msra.mxu0 %v1266
    %1308 = vmatprep.subr.mxu0 0.0
    %1309 = vmatpush1.msra.mxu0 %v1265
    %1310 = vmatprep.subr.mxu0 0.0
    %1311 = vmatpush1.msra.mxu0 %v1264
    %1312 = vmatprep.subr.mxu0 0.0
    %1313 = vmatpush2.msra.mxu0 0.0
    %1314 = vmatprep.subr.mxu0 0.0
    %1315 = vmatpush2.msra.mxu0 0.0
    %1316 = vmatprep.subr.mxu0 0.0
    %1317 = vmatpush2.msra.mxu0 0.0
    %1318 = vmatprep.subr.mxu0 0.0
    %1319 = vmatpush2.msra.mxu0 0.0
    %1320 = vmatprep.subr.mxu0 0.0
    %1321 = vmatpush2.msra.mxu0 0.0
    %1322 = vmatprep.subr.mxu0 0.0
    %1323 = vmatpush2.msra.mxu0 0.0
    %1324 = vmatprep.subr.mxu0 0.0
    %1325 = vmatpush2.msra.mxu0 0.0
    %1326 = vmatprep.subr.mxu0 0.0
    %1327 = vmatpush2.msra.mxu0 0.0
    %1328 = vmatprep.subr.mxu0 0.0
    %1329 = vmatpush2.msra.mxu0 0.0
    %1330 = vmatprep.subr.mxu0 0.0
    %1331 = vmatpush2.msra.mxu0 0.0
    %1332 = vmatprep.subr.mxu0 0.0
    %1333 = vmatpush2.msra.mxu0 0.0
    %1334 = vmatprep.subr.mxu0 0.0
    %1335 = vmatpush2.msra.mxu0 0.0
    %1336 = vmatprep.subr.mxu0 0.0
    %1337 = vmatpush2.msra.mxu0 0.0
    %1338 = vmatprep.subr.mxu0 0.0
    %1339 = vmatpush2.msra.mxu0 0.0
    %1340 = vmatprep.subr.mxu0 0.0
    %1341 = vmatpush2.msra.mxu0 0.0
    %1342 = vmatprep.subr.mxu0 0.0
    %1343 = vmatpush2.msra.mxu0 0.0
    %1344 = vmatprep.mubr.f32.mxu0 0.0
    %1345 = vmatmul.mubr.f32.gmra.mxu0 %v1259
    %v1346 = vpop.f32.mrf.mxu0
    %v1347 = vadd.f32 0.0, %v1346
    %v1348 = vpop.f32.mrf.mxu0
    %1349 = vdwg.mxu0
    %v1350 = vadd.f32 %v1187, %v1347
    %v1351 = vld [vmem:[#allocation2] sm:$0x3]
    %v1352 = vadd.f32 %v1351, %v1350
    %vm1353 = vcmask 254976
    %1354 = vst.msk [vmem:[#allocation2] sm:$0x3] %vm1353, %v1352
    // Predicated region
    $region26: #{tpu_custom_call.1} parent=1 // pred_check
      %p1355 = pneg %p21
    $region27: #{tpu_custom_call.1} parent=1 // pred_check_branch
      %1357 = sbr.rel (%p1355) target = $region29
    $region28: #{tpu_custom_call.1} parent=1 // pred_region
      %v1358 = vld [vmem:[#allocation2] sm:$0x3]
      %v1359 = vld [vmem:[%s4] sm:$0x1]
      %v1361 = vlaneseq
      %v1362 = vshrl.u32 %v1361, 7
      %v1363 = vsub.s32 0, %v1362
      %v1364 = vrot.slane %v1359, %v1363
      %v1366 = vadd.f32 %v1358, %v1364
      %v1367 = vtanh.pop %v1366
      %1368 = vst.msk [vmem:[#allocation3] sm:$0x3] %vm1353, %v1367
    $region29: #{tpu_custom_call.1} parent=1 // pred_fallthru
      _
    // Predicated region
    $region30: #{tpu_custom_call.1} parent=1 // pred_check
      _
    $region31: #{tpu_custom_call.1} parent=1 // pred_check_branch
      %1370 = sbr.rel (0) target = $region33
    $region32: #{tpu_custom_call.1} parent=1 // pred_region
      %s1372 = ssub.s32 32, 32
      %1373 = vsyncadd [#allocation4], %s1372
      %s1375 = sshll.u32 [#allocation3], 4
      %s1376 = int_to_ptr.vmem [resolvable:$true] %s1375
      %1378 = dma.vmem_to_hbm [thread:$0]  %s1376, 32, %s5, [#allocation4]
    $region33: #{tpu_custom_call.1} parent=1 // pred_fallthru
      _
    // Predicated region
    $region34: #{tpu_custom_call.1} parent=1 // pred_check
      _
    $region35: #{tpu_custom_call.1} parent=1 // pred_check_branch
      %1380 = sbr.rel (0) target = $region37
    $region36: #{tpu_custom_call.1} parent=1 // pred_region
      %1381 = dma.done [#allocation4], 32
    $region37: #{tpu_custom_call.1} parent=1 // pred_fallthru
      _
    %1382 = vsyncpa [#allocation4], 1

</llo_original>
